<compile_context>
chip_gen: v7x
topology: tpu7x:2x2x1
jax: 0.10.0
libtpu: 0.0.40
codegen_flags: <defaults>
</compile_context>

<pallas_src>
import jax
import jax.numpy as jnp
import numpy as np
from jax.experimental import pallas as pl
from jax.experimental.pallas import tpu as pltpu

INPUT_CHANNELS = 1
OUTPUT_CHANNELS = 51


def _round_up(v, m):
    return (v + m - 1) // m * m


# ------------------------------ Pallas kernel ------------------------------

def _gnn_kernel(a_ref, p_ref, x_ref,
                w1r_ref, w1s_ref, b1_ref,
                w2_ref, b2_ref,
                w3_ref, b3_ref,
                wl_ref, bl_ref,
                out_ref):
    a = a_ref[...]                     # [N, N] bf16 dense adjacency (A[dst, src])
    x = x_ref[...]                     # [N, 1] f32 node features (C_in == 1)

    # ---- conv1 (C_in = 1): one matvec on the MXU, then VPU broadcast mults ----
    # agg1[i] = sum_j A[i, j] * x[j]
    agg1 = jnp.dot(a, x.astype(jnp.bfloat16),
                   preferred_element_type=jnp.float32)          # [N, 1]
    h = agg1 * w1r_ref[...] + x * w1s_ref[...] + b1_ref[...]    # [N,1]*[1,H] -> [N,H]
    h = jnp.maximum(h, 0.0)                                     # relu

    # ---- conv2 / conv3: fused rel+root matmul: [agg | h] @ [W_rel; W_root] ----
    def conv_fused(h, w_fused, b):
        agg = jnp.dot(a, h.astype(jnp.bfloat16),
                      preferred_element_type=jnp.float32)       # [N, H]
        z = jnp.concatenate([agg, h], axis=-1)                  # [N, 2H]
        return jnp.dot(z, w_fused, preferred_element_type=jnp.float32) + b

    h = jnp.maximum(conv_fused(h, w2_ref[...], b2_ref[...]), 0.0)
    h = conv_fused(h, w3_ref[...], b3_ref[...])                 # no relu after conv3

    # global_mean_pool: [G, N] @ [N, H] -> [G, H]
    pooled = jnp.dot(p_ref[...], h, preferred_element_type=jnp.float32)

    # TODO(synk): dropout is identity here (inference, training=False); training-mode
    # dropout would use pltpu.prng_seed / pltpu.prng_random_bits.

    # final Linear: [G, H] @ [H, OUT_pad] + [1, OUT_pad]   (lane-dense, unmasked store)
    out_ref[...] = (jnp.dot(pooled, wl_ref[...],
                            preferred_element_type=jnp.float32)
                    + bl_ref[...])


def gnn_forward(a, p, x, params):
    """a: [B, N, N] bf16 adjacency, p: [B, G, N] f32 pooling, x: [B, N, 1] f32."""
    assert x.shape[-1] == INPUT_CHANNELS == 1   # conv1 special case relies on C_in == 1
    B, N, _ = a.shape
    G = p.shape[1]
    OUTp = params["b_lin"].shape[-1]

    def batched(trailing_shape):
        # one (squeezed) batch element per grid step
        return pl.BlockSpec((None,) + trailing_shape,
                            lambda b: (b,) + (0,) * len(trailing_shape))

    def resident(arr):
        # constant block index -> weight stays VMEM-resident across the grid
        return pl.BlockSpec(arr.shape, lambda b: (0,) * arr.ndim)

    weights = (params["w1_rel"], params["w1_root"], params["b1"],
               params["w2_fused"], params["b2"],
               params["w3_fused"], params["b3"],
               params["w_lin"], params["b_lin"])

    return pl.pallas_call(
        _gnn_kernel,
        grid=(B,),
        out_shape=jax.ShapeDtypeStruct((B, G, OUTp), jnp.float32),
        in_specs=[batched((N, N)),                      # adjacency
                  batched((G, N)),                      # pooling matrix
                  batched((N, x.shape[-1]))]            # node features
                 + [resident(w) for w in weights],
        out_specs=batched((G, OUTp)),
        compiler_params=pltpu.CompilerParams(
            dimension_semantics=("parallel",),          # shard batch axis across TCs (v7x)
            vmem_limit_bytes=48 * 1024 * 1024),
    )(a, p, x, *weights)


# ---------------------------- glue (plain JAX) ----------------------------

def build_dense_adj(edge_index, edge_weight, n_pad):
    src, dst = edge_index[0], edge_index[1]
    a = jnp.zeros((n_pad, n_pad), jnp.float32)
    # messages flow src -> dst; aggregation happens at dst; multi-edges summed
    return a.at[dst, src].add(edge_weight)


def build_mean_pool_matrix(batch_vec, g_pad, n_pad):
    # padded nodes get graph id -1 (match nothing); padded graphs get zero rows
    bpad = jnp.full((n_pad,), -1, jnp.int32).at[:batch_vec.shape[0]].set(batch_vec)
    onehot = (bpad[None, :] == jnp.arange(g_pad)[:, None]).astype(jnp.float32)
    counts = jnp.maximum(onehot.sum(axis=1, keepdims=True), 1.0)
    return onehot / counts


def init_params(key, hidden):
    ks = jax.random.split(key, 8)
    scale = 0.1
    hp = _round_up(hidden, 128)
    outp = _round_up(OUTPUT_CHANNELS, 128)

    def w(k, shape):
        return (scale * jax.random.normal(k, shape)).astype(jnp.float32)

    def pad(m, rows, cols):
        return jnp.zeros((rows, cols), jnp.float32).at[:m.shape[0], :m.shape[1]].set(m)

    def fuse(w_rel, w_root):
        # rows [0:hp) hit the aggregated messages, rows [hp:2hp) the root features;
        # matches z = concat([agg, h], axis=-1) in the kernel.
        return jnp.concatenate([pad(w_rel, hp, hp), pad(w_root, hp, hp)], axis=0)

    return {
        # conv1: in=1 -> hidden (broadcast rows, lane-padded; padded cols zero)
        "w1_rel":  pad(w(ks[0], (INPUT_CHANNELS, hidden)), 1, hp),
        "w1_root": pad(w(ks[1], (INPUT_CHANNELS, hidden)), 1, hp),
        "b1":      jnp.zeros((1, hp), jnp.float32),
        # conv2 / conv3: fused [2*hp, hp] weights, zero-filled padding
        "w2_fused": fuse(w(ks[2], (hidden, hidden)), w(ks[3], (hidden, hidden))),
        "b2":       pad(jnp.full((1, hidden), 0.01, jnp.float32), 1, hp),
        "w3_fused": fuse(w(ks[4], (hidden, hidden)), w(ks[5], (hidden, hidden))),
        "b3":       pad(jnp.full((1, hidden), -0.01, jnp.float32), 1, hp),
        # final Linear: hidden -> 51, lane-padded to outp (padded cols zero)
        "w_lin":    pad(w(ks[6], (hidden, OUTPUT_CHANNELS)), hp, outp),
        "b_lin":    pad(w(ks[7], (1, OUTPUT_CHANNELS)), 1, outp),
    }


def reference_forward(a_f32, p, x, params):
    """Pure-JAX reference (f32 adjacency) with the same padded/fused weights."""
    def conv_fused(h, w_fused, b):
        agg = jnp.einsum("bij,bjh->bih", a_f32, h)
        z = jnp.concatenate([agg, h], axis=-1)
        return jnp.einsum("bih,ho->bio", z, w_fused) + b

    agg1 = jnp.einsum("bij,bjc->bic", a_f32, x)
    h = agg1 * params["w1_rel"] + x * params["w1_root"] + params["b1"]
    h = jnp.maximum(h, 0.0)
    h = jnp.maximum(conv_fused(h, params["w2_fused"], params["b2"]), 0.0)
    h = conv_fused(h, params["w3_fused"], params["b3"])
    pooled = jnp.einsum("bgn,bnh->bgh", p, h)
    return jnp.einsum("bgh,ho->bgo", pooled, params["w_lin"]) + params["b_lin"]


# --------------------------------- demo ---------------------------------

if __name__ == "__main__":
    key = jax.random.PRNGKey(0)
    k_param, k_data = jax.random.split(key)

    hidden = 64
    B = 2                     # graph-batch elements (grid axis)
    graphs_per_elem = 2
    nodes_per_graph = 24
    edges_per_graph = 96
    n_real = graphs_per_elem * nodes_per_graph          # 48
    n_pad = _round_up(n_real, 128)                      # 128
    g_pad = _round_up(graphs_per_elem, 8)               # 8

    a_list, p_list, x_list = [], [], []
    for bi in range(B):
        kb = jax.random.fold_in(k_data, bi)
        kx, ke_src, ke_dst, kw = jax.random.split(kb, 4)
        xb = jax.random.normal(kx, (n_real, INPUT_CHANNELS), jnp.float32)
        srcs, dsts = [], []
        for g in range(graphs_per_elem):
            base = g * nodes_per_graph
            srcs.append(base + jax.random.randint(jax.random.fold_in(ke_src, g),
                                                  (edges_per_graph,), 0, nodes_per_graph))
            dsts.append(base + jax.random.randint(jax.random.fold_in(ke_dst, g),
                                                  (edges_per_graph,), 0, nodes_per_graph))
        edge_index = jnp.stack([jnp.concatenate(srcs),
                                jnp.concatenate(dsts)]).astype(jnp.int32)
        edge_weight = jax.random.uniform(kw, (edge_index.shape[1],), jnp.float32, 0.5, 1.5)
        batch_vec = jnp.repeat(jnp.arange(graphs_per_elem, dtype=jnp.int32), nodes_per_graph)

        a_list.append(build_dense_adj(edge_index, edge_weight, n_pad))
        p_list.append(build_mean_pool_matrix(batch_vec, g_pad, n_pad))
        x_list.append(jnp.zeros((n_pad, INPUT_CHANNELS), jnp.float32).at[:n_real].set(xb))

    a_f32 = jnp.stack(a_list)                 # [B, N, N] f32 (reference only)
    a = a_f32.astype(jnp.bfloat16)            # O(N^2) operand in bf16 for the kernel
    p = jnp.stack(p_list)                     # [B, G_pad, N]
    x = jnp.stack(x_list)                     # [B, N, 1]

    params = init_params(k_param, hidden)

    out_padded = gnn_forward(a, p, x, params)
    out_padded = jax.block_until_ready(out_padded)
    out = out_padded[:, :graphs_per_elem, :OUTPUT_CHANNELS]   # slice away lane/graph padding

    ref = reference_forward(a_f32, p, x, params)[:, :graphs_per_elem, :OUTPUT_CHANNELS]

    assert out.shape == (B, graphs_per_elem, OUTPUT_CHANNELS)
    assert jnp.all(jnp.isfinite(out))
    np.testing.assert_allclose(np.asarray(out), np.asarray(ref), rtol=5e-2, atol=5e-2)
    print("KERNEL_OK")
</pallas_src>

<mosaic_0001>
module attributes {stable_mosaic.version = 11 : i64} {
  func.func @_gnn_kernel(%arg0: i32, %arg1: memref<1x128x128xbf16, #tpu.memory_space<vmem>>, %arg2: memref<1x8x128xf32, #tpu.memory_space<vmem>>, %arg3: memref<1x128x1xf32, #tpu.memory_space<vmem>>, %arg4: memref<1x128xf32, #tpu.memory_space<vmem>>, %arg5: memref<1x128xf32, #tpu.memory_space<vmem>>, %arg6: memref<1x128xf32, #tpu.memory_space<vmem>>, %arg7: memref<256x128xf32, #tpu.memory_space<vmem>>, %arg8: memref<1x128xf32, #tpu.memory_space<vmem>>, %arg9: memref<256x128xf32, #tpu.memory_space<vmem>>, %arg10: memref<1x128xf32, #tpu.memory_space<vmem>>, %arg11: memref<128x128xf32, #tpu.memory_space<vmem>>, %arg12: memref<1x128xf32, #tpu.memory_space<vmem>>, %arg13: memref<1x8x128xf32, #tpu.memory_space<vmem>>) attributes {dimension_semantics = [#tpu.dimension_semantics<parallel>], iteration_bounds = array<i64: 2>, scalar_prefetch = 0 : i64, scratch_operands = 0 : i64, tpu.core_type = #tpu.core_type<tc>, window_params = [{transform_indices = @transform_0, window_bounds = array<i64: 1, 128, 128>}, {transform_indices = @transform_1, window_bounds = array<i64: 1, 8, 128>}, {transform_indices = @transform_2, window_bounds = array<i64: 1, 128, 1>}, {pipeline_mode = #tpu.pipeline_mode<synchronous>, transform_indices = @transform_3, window_bounds = array<i64: 1, 128>}, {pipeline_mode = #tpu.pipeline_mode<synchronous>, transform_indices = @transform_4, window_bounds = array<i64: 1, 128>}, {pipeline_mode = #tpu.pipeline_mode<synchronous>, transform_indices = @transform_5, window_bounds = array<i64: 1, 128>}, {pipeline_mode = #tpu.pipeline_mode<synchronous>, transform_indices = @transform_6, window_bounds = array<i64: 256, 128>}, {pipeline_mode = #tpu.pipeline_mode<synchronous>, transform_indices = @transform_7, window_bounds = array<i64: 1, 128>}, {pipeline_mode = #tpu.pipeline_mode<synchronous>, transform_indices = @transform_8, window_bounds = array<i64: 256, 128>}, {pipeline_mode = #tpu.pipeline_mode<synchronous>, transform_indices = @transform_9, window_bounds = array<i64: 1, 128>}, {pipeline_mode = #tpu.pipeline_mode<synchronous>, transform_indices = @transform_10, window_bounds = array<i64: 128, 128>}, {pipeline_mode = #tpu.pipeline_mode<synchronous>, transform_indices = @transform_11, window_bounds = array<i64: 1, 128>}, {transform_indices = @transform_12, window_bounds = array<i64: 1, 8, 128>}]} {
    %c0 = arith.constant 0 : index
    %c0_0 = arith.constant 0 : index
    %c0_1 = arith.constant 0 : index
    %0 = vector.load %arg1[%c0, %c0_0, %c0_1] : memref<1x128x128xbf16, #tpu.memory_space<vmem>>, vector<1x128x128xbf16>
    %1 = vector.shape_cast %0 : vector<1x128x128xbf16> to vector<128x128xbf16>
    %c0_2 = arith.constant 0 : index
    %c0_3 = arith.constant 0 : index
    %c0_4 = arith.constant 0 : index
    %2 = vector.load %arg3[%c0_2, %c0_3, %c0_4] : memref<1x128x1xf32, #tpu.memory_space<vmem>>, vector<1x128x1xf32>
    %3 = vector.shape_cast %2 : vector<1x128x1xf32> to vector<128x1xf32>
    %4 = arith.truncf %3 : vector<128x1xf32> to vector<128x1xbf16>
    %cst = arith.constant dense<0.000000e+00> : vector<128x1xf32>
    %5 = tpu.matmul %1, %4, %cst {dimension_numbers = #tpu.dot_dimension_numbers<[1], [0], [0], [1], [0, 0, 1, 1], [], []>} : vector<128x128xbf16>, vector<128x1xbf16>, vector<128x1xf32> -> vector<128x1xf32>
    %c0_5 = arith.constant 0 : index
    %c0_6 = arith.constant 0 : index
    %6 = vector.load %arg4[%c0_5, %c0_6] : memref<1x128xf32, #tpu.memory_space<vmem>>, vector<1x128xf32>
    %7 = vector.broadcast %5 : vector<128x1xf32> to vector<128x128xf32>
    %8 = vector.broadcast %6 : vector<1x128xf32> to vector<128x128xf32>
    %9 = arith.mulf %7, %8 : vector<128x128xf32>
    %c0_7 = arith.constant 0 : index
    %c0_8 = arith.constant 0 : index
    %10 = vector.load %arg5[%c0_7, %c0_8] : memref<1x128xf32, #tpu.memory_space<vmem>>, vector<1x128xf32>
    %11 = vector.broadcast %3 : vector<128x1xf32> to vector<128x128xf32>
    %12 = vector.broadcast %10 : vector<1x128xf32> to vector<128x128xf32>
    %13 = arith.mulf %11, %12 : vector<128x128xf32>
    %14 = arith.addf %9, %13 : vector<128x128xf32>
    %c0_9 = arith.constant 0 : index
    %c0_10 = arith.constant 0 : index
    %15 = vector.load %arg6[%c0_9, %c0_10] : memref<1x128xf32, #tpu.memory_space<vmem>>, vector<1x128xf32>
    %16 = vector.broadcast %15 : vector<1x128xf32> to vector<128x128xf32>
    %17 = arith.addf %14, %16 : vector<128x128xf32>
    %cst_11 = arith.constant 0.000000e+00 : f32
    %18 = vector.broadcast %cst_11 : f32 to vector<128x128xf32>
    %19 = arith.maximumf %17, %18 : vector<128x128xf32>
    %c0_12 = arith.constant 0 : index
    %c0_13 = arith.constant 0 : index
    %20 = vector.load %arg7[%c0_12, %c0_13] : memref<256x128xf32, #tpu.memory_space<vmem>>, vector<256x128xf32>
    %c0_14 = arith.constant 0 : index
    %c0_15 = arith.constant 0 : index
    %21 = vector.load %arg8[%c0_14, %c0_15] : memref<1x128xf32, #tpu.memory_space<vmem>>, vector<1x128xf32>
    %22 = arith.truncf %19 : vector<128x128xf32> to vector<128x128xbf16>
    %cst_16 = arith.constant dense<0.000000e+00> : vector<128x128xf32>
    %23 = tpu.matmul %1, %22, %cst_16 {dimension_numbers = #tpu.dot_dimension_numbers<[1], [0], [0], [1], [0, 0, 1, 1], [], []>} : vector<128x128xbf16>, vector<128x128xbf16>, vector<128x128xf32> -> vector<128x128xf32>
    %24 = tpu.concatenate %23, %19 in 1 : vector<128x128xf32>, vector<128x128xf32> -> vector<128x256xf32>
    %cst_17 = arith.constant dense<0.000000e+00> : vector<128x128xf32>
    %25 = tpu.matmul %24, %20, %cst_17 {dimension_numbers = #tpu.dot_dimension_numbers<[1], [0], [0], [1], [0, 0, 1, 1], [], []>} : vector<128x256xf32>, vector<256x128xf32>, vector<128x128xf32> -> vector<128x128xf32>
    %26 = vector.broadcast %21 : vector<1x128xf32> to vector<128x128xf32>
    %27 = arith.addf %25, %26 : vector<128x128xf32>
    %cst_18 = arith.constant 0.000000e+00 : f32
    %28 = vector.broadcast %cst_18 : f32 to vector<128x128xf32>
    %29 = arith.maximumf %27, %28 : vector<128x128xf32>
    %c0_19 = arith.constant 0 : index
    %c0_20 = arith.constant 0 : index
    %30 = vector.load %arg9[%c0_19, %c0_20] : memref<256x128xf32, #tpu.memory_space<vmem>>, vector<256x128xf32>
    %c0_21 = arith.constant 0 : index
    %c0_22 = arith.constant 0 : index
    %31 = vector.load %arg10[%c0_21, %c0_22] : memref<1x128xf32, #tpu.memory_space<vmem>>, vector<1x128xf32>
    %32 = arith.truncf %29 : vector<128x128xf32> to vector<128x128xbf16>
    %cst_23 = arith.constant dense<0.000000e+00> : vector<128x128xf32>
    %33 = tpu.matmul %1, %32, %cst_23 {dimension_numbers = #tpu.dot_dimension_numbers<[1], [0], [0], [1], [0, 0, 1, 1], [], []>} : vector<128x128xbf16>, vector<128x128xbf16>, vector<128x128xf32> -> vector<128x128xf32>
    %34 = tpu.concatenate %33, %29 in 1 : vector<128x128xf32>, vector<128x128xf32> -> vector<128x256xf32>
    %cst_24 = arith.constant dense<0.000000e+00> : vector<128x128xf32>
    %35 = tpu.matmul %34, %30, %cst_24 {dimension_numbers = #tpu.dot_dimension_numbers<[1], [0], [0], [1], [0, 0, 1, 1], [], []>} : vector<128x256xf32>, vector<256x128xf32>, vector<128x128xf32> -> vector<128x128xf32>
    %36 = vector.broadcast %31 : vector<1x128xf32> to vector<128x128xf32>
    %37 = arith.addf %35, %36 : vector<128x128xf32>
    %c0_25 = arith.constant 0 : index
    %c0_26 = arith.constant 0 : index
    %c0_27 = arith.constant 0 : index
    %38 = vector.load %arg2[%c0_25, %c0_26, %c0_27] : memref<1x8x128xf32, #tpu.memory_space<vmem>>, vector<1x8x128xf32>
    %39 = vector.shape_cast %38 : vector<1x8x128xf32> to vector<8x128xf32>
    %cst_28 = arith.constant dense<0.000000e+00> : vector<8x128xf32>
    %40 = tpu.matmul %39, %37, %cst_28 {dimension_numbers = #tpu.dot_dimension_numbers<[1], [0], [0], [1], [0, 0, 1, 1], [], []>} : vector<8x128xf32>, vector<128x128xf32>, vector<8x128xf32> -> vector<8x128xf32>
    %c0_29 = arith.constant 0 : index
    %c0_30 = arith.constant 0 : index
    %41 = vector.load %arg11[%c0_29, %c0_30] : memref<128x128xf32, #tpu.memory_space<vmem>>, vector<128x128xf32>
    %cst_31 = arith.constant dense<0.000000e+00> : vector<8x128xf32>
    %42 = tpu.matmul %40, %41, %cst_31 {dimension_numbers = #tpu.dot_dimension_numbers<[1], [0], [0], [1], [0, 0, 1, 1], [], []>} : vector<8x128xf32>, vector<128x128xf32>, vector<8x128xf32> -> vector<8x128xf32>
    %c0_32 = arith.constant 0 : index
    %c0_33 = arith.constant 0 : index
    %43 = vector.load %arg12[%c0_32, %c0_33] : memref<1x128xf32, #tpu.memory_space<vmem>>, vector<1x128xf32>
    %44 = vector.broadcast %43 : vector<1x128xf32> to vector<8x128xf32>
    %45 = arith.addf %42, %44 : vector<8x128xf32>
    %c0_34 = arith.constant 0 : index
    %c0_35 = arith.constant 0 : index
    %c0_36 = arith.constant 0 : index
    %46 = vector.load %arg13[%c0_34, %c0_35, %c0_36] : memref<1x8x128xf32, #tpu.memory_space<vmem>>, vector<1x8x128xf32>
    %47 = vector.shape_cast %46 : vector<1x8x128xf32> to vector<8x128xf32>
    %48 = vector.shape_cast %45 : vector<8x128xf32> to vector<1x8x128xf32>
    tpu.vector_store %arg13[%c0_34, %c0_35, %c0_36], %48 {strides = array<i32>} : memref<1x8x128xf32, #tpu.memory_space<vmem>>, vector<1x8x128xf32>,
    return
  }
  func.func @transform_0(%arg0: i32) -> (i32, i32, i32) {
    %c0_i32 = arith.constant 0 : i32
    %c0_i32_0 = arith.constant 0 : i32
    %c0_i32_1 = arith.constant 0 : i32
    return %arg0, %c0_i32, %c0_i32_0 : i32, i32, i32
  }
  func.func @transform_1(%arg0: i32) -> (i32, i32, i32) {
    %c0_i32 = arith.constant 0 : i32
    %c0_i32_0 = arith.constant 0 : i32
    %c0_i32_1 = arith.constant 0 : i32
    return %arg0, %c0_i32, %c0_i32_0 : i32, i32, i32
  }
  func.func @transform_2(%arg0: i32) -> (i32, i32, i32) {
    %c0_i32 = arith.constant 0 : i32
    %c0_i32_0 = arith.constant 0 : i32
    %c0_i32_1 = arith.constant 0 : i32
    return %arg0, %c0_i32, %c0_i32_0 : i32, i32, i32
  }
  func.func @transform_3(%arg0: i32) -> (i32, i32) {
    %c0_i32 = arith.constant 0 : i32
    %c0_i32_0 = arith.constant 0 : i32
    %c0_i32_1 = arith.constant 0 : i32
    return %c0_i32, %c0_i32_0 : i32, i32
  }
  func.func @transform_4(%arg0: i32) -> (i32, i32) {
    %c0_i32 = arith.constant 0 : i32
    %c0_i32_0 = arith.constant 0 : i32
    %c0_i32_1 = arith.constant 0 : i32
    return %c0_i32, %c0_i32_0 : i32, i32
  }
  func.func @transform_5(%arg0: i32) -> (i32, i32) {
    %c0_i32 = arith.constant 0 : i32
    %c0_i32_0 = arith.constant 0 : i32
    %c0_i32_1 = arith.constant 0 : i32
    return %c0_i32, %c0_i32_0 : i32, i32
  }
  func.func @transform_6(%arg0: i32) -> (i32, i32) {
    %c0_i32 = arith.constant 0 : i32
    %c0_i32_0 = arith.constant 0 : i32
    %c0_i32_1 = arith.constant 0 : i32
    return %c0_i32, %c0_i32_0 : i32, i32
  }
  func.func @transform_7(%arg0: i32) -> (i32, i32) {
    %c0_i32 = arith.constant 0 : i32
    %c0_i32_0 = arith.constant 0 : i32
    %c0_i32_1 = arith.constant 0 : i32
    return %c0_i32, %c0_i32_0 : i32, i32
  }
  func.func @transform_8(%arg0: i32) -> (i32, i32) {
    %c0_i32 = arith.constant 0 : i32
    %c0_i32_0 = arith.constant 0 : i32
    %c0_i32_1 = arith.constant 0 : i32
    return %c0_i32, %c0_i32_0 : i32, i32
  }
  func.func @transform_9(%arg0: i32) -> (i32, i32) {
    %c0_i32 = arith.constant 0 : i32
    %c0_i32_0 = arith.constant 0 : i32
    %c0_i32_1 = arith.constant 0 : i32
    return %c0_i32, %c0_i32_0 : i32, i32
  }
  func.func @transform_10(%arg0: i32) -> (i32, i32) {
    %c0_i32 = arith.constant 0 : i32
    %c0_i32_0 = arith.constant 0 : i32
    %c0_i32_1 = arith.constant 0 : i32
    return %c0_i32, %c0_i32_0 : i32, i32
  }
  func.func @transform_11(%arg0: i32) -> (i32, i32) {
    %c0_i32 = arith.constant 0 : i32
    %c0_i32_0 = arith.constant 0 : i32
    %c0_i32_1 = arith.constant 0 : i32
    return %c0_i32, %c0_i32_0 : i32, i32
  }
  func.func @transform_12(%arg0: i32) -> (i32, i32, i32) {
    %c0_i32 = arith.constant 0 : i32
    %c0_i32_0 = arith.constant 0 : i32
    %c0_i32_1 = arith.constant 0 : i32
    return %arg0, %c0_i32, %c0_i32_0 : i32, i32, i32
  }
}

</mosaic_0001>

<llo_original>
// kernel: tpu_custom_call.1
$region0: #{tpu_custom_call.1}
  #allocation0 [shape = 'u32[]', space=smem, size = 0x4, offset = 0x4, fixed_abs, tag = 'smem constant byte address 0x4 - core index']
  #allocation1 [shape = 'u32[144,128]{1,0:T(1,128)}', space=vmem, size = 0x12000, scoped, tag = 'internal scratch']
  %s0 = inlined_call_operand.hbm [shape: bf16[2,128,128], index: 0, kind: input, shape index: {}]
  %s1 = inlined_call_operand.vmem [shape: f32[2,8,128], index: 1, kind: input, shape index: {}]
  %s2 = inlined_call_operand.vmem [shape: f32[2,128,1], index: 2, kind: input, shape index: {}]
  %s3 = inlined_call_operand.vmem [shape: f32[1,128], index: 3, kind: input, shape index: {}]
  %s4 = inlined_call_operand.vmem [shape: f32[1,128], index: 4, kind: input, shape index: {}]
  %s5 = inlined_call_operand.vmem [shape: f32[1,128], index: 5, kind: input, shape index: {}]
  %s6 = inlined_call_operand.vmem [shape: f32[256,128], index: 6, kind: input, shape index: {}]
  %s7 = inlined_call_operand.vmem [shape: f32[1,128], index: 7, kind: input, shape index: {}]
  %s8 = inlined_call_operand.hbm [shape: f32[256,128], index: 8, kind: input, shape index: {}]
  %s9 = inlined_call_operand.vmem [shape: f32[1,128], index: 9, kind: input, shape index: {}]
  %s10 = inlined_call_operand.hbm [shape: f32[128,128], index: 10, kind: input, shape index: {}]
  %s11 = inlined_call_operand.vmem [shape: f32[1,128], index: 11, kind: input, shape index: {}]
  %s12 = inlined_call_operand.hbm [shape: f32[2,8,128], index: 12, kind: output, shape index: {}]
  %s13 = sld [smem:[#allocation0]]
  $region93: #{tpu_custom_call.1} parent=0
    _
  %s15 = ssub.s32 1, %s13
  %s16 = scalar_select 0, %s15, %s13
  $region1: #{tpu_custom_call.1} parent=0
    #allocation2 [shape = 'u8[65536]{0}', space=vmem, size = 0x10000, scoped, tag = 'input window, operand 0']
    #allocation3 [shape = 's32[2]{0}', space=sflag, size = 0x8, scoped, tag = 'scoped memory for tpu_custom_call.1']
    #allocation4 [shape = 's32[2]{0}', space=sflag, size = 0x8, scoped, tag = 'scoped memory for tpu_custom_call.1']
    #allocation5 [shape = 'u8[131072]{0}', space=vmem, size = 0x20000, scoped, tag = 'input window, operand 8, single buffered']
    #allocation6 [shape = 's32[1]{0}', space=sflag, size = 0x4, scoped, tag = 'scoped memory for tpu_custom_call.1']
    #allocation7 [shape = 'u8[65536]{0}', space=vmem, size = 0x10000, scoped, tag = 'input window, operand 10, single buffered']
    #allocation8 [shape = 'u8[8192]{0}', space=vmem, size = 0x2000, scoped, tag = 'output window, operand 0']
    %17 = vsyncpa [#allocation3], 0
    %s18 = scalar_lea.sflag [#allocation3], 1
    %19 = vsyncpa %s18, 0
    %20 = vsyncpa [#allocation6], 0
    %21 = vsyncpa [#allocation4], 0
    %s22 = scalar_lea.sflag [#allocation4], 1
    %23 = vsyncpa %s22, 0
    loop: start=0, step=1, limit=4
    $region2: #{tpu_custom_call.1} parent=1 // loop_pre_header
      _
    $region3: #{tpu_custom_call.1} parent=1 // loop_header
      %s25 = sphi 0, %s29
      %p26 = scmp.ge.s32.totalorder %s25, 4
      %s35 = sphi 0, %s37
      %s38 = sphi 0, %s35
      %s39 = sphi 0, %s38
      %s55 = sphi 0, %s39
      %s61 = sphi 0, %s63
      %s64 = sphi 0, %s61
      %s65 = sphi 0, %s64
      %s81 = sphi 0, %s65
      %s87 = sphi 0, %s89
      %s90 = sphi 0, %s87
      %s91 = sphi 0, %s90
      %s107 = sphi 0, %s91
      %s111 = sphi 0, %s111
      %s113 = sphi 0, %s111
      %s114 = sphi 0, %s113
      %s128 = sphi 0, %s114
      %s132 = sphi 0, %s132
      %s134 = sphi 0, %s132
      %s135 = sphi 0, %s134
      %s149 = sphi 0, %s135
      %s153 = sphi 0, %s153
      %s155 = sphi 0, %s153
      %s156 = sphi 0, %s155
      %s170 = sphi 0, %s156
      %s174 = sphi 0, %s174
      %s176 = sphi 0, %s174
      %s177 = sphi 0, %s176
      %s191 = sphi 0, %s177
      %s195 = sphi 0, %s195
      %s197 = sphi 0, %s195
      %s198 = sphi 0, %s197
      %s212 = sphi 0, %s198
      %s216 = sphi 0, %s216
      %s218 = sphi 0, %s216
      %s219 = sphi 0, %s218
      %s233 = sphi 0, %s219
      %s237 = sphi 0, %s237
      %s239 = sphi 0, %s237
      %s240 = sphi 0, %s239
      %s254 = sphi 0, %s240
      %s258 = sphi 0, %s258
      %s260 = sphi 0, %s258
      %s261 = sphi 0, %s260
      %s275 = sphi 0, %s261
      %s279 = sphi 0, %s279
      %s281 = sphi 0, %s279
      %s282 = sphi 0, %s281
      %s296 = sphi 0, %s282
      %s302 = sphi 0, %s304
      %s305 = sphi 0, %s302
      %s306 = sphi 0, %s305
      %s322 = sphi 0, %s306
    $region4: #{tpu_custom_call.1} parent=1 // loop_header_branch
      %28 = sbr.rel (%p26) target = $region8
    $region5: #{tpu_custom_call.1} parent=1 // loop_body
      %s30 = ssub.s32 %s25, 1
      %s31 = ssub.s32 %s25, 2
      %s32 = sadd.s32 %s25, 1
      %s33 = ssub.s32 %s25, %s32
      %p34 = scmp.eq.s32.totalorder %s33, 0
      %s36 = sadd.s32 %s35, 1
      %s37 = scalar_select %p34, %s35, %s36
      %p40 = pneg %p34
      %p41 = scmp.eq.s32.totalorder %s25, 1
      %p42 = por %p40, %p41
      %p43 = scmp.ne.s32.totalorder %s35, %s38
      %p44 = scmp.eq.s32.totalorder %s25, 0
      %p45 = por %p43, %p44
      %p46 = scmp.ne.s32.totalorder %s35, %s38
      %p47 = scmp.eq.s32.totalorder %s30, 1
      %p48 = por %p46, %p47
      %p49 = scmp.ne.s32.totalorder %s38, %s39
      %p50 = scmp.eq.s32.totalorder %s30, 0
      %p51 = por %p49, %p50
      %p52 = scmp.ne.s32.totalorder %s38, %s39
      %p53 = scmp.eq.s32.totalorder %s31, 1
      %p54 = por %p52, %p53
      %p56 = scmp.ne.s32.totalorder %s39, %s55
      %p57 = scmp.eq.s32.totalorder %s31, 0
      %p58 = por %p56, %p57
      %s59 = ssub.s32 %s25, %s32
      %p60 = scmp.eq.s32.totalorder %s59, 0
      %s62 = sadd.s32 %s61, 1
      %s63 = scalar_select %p60, %s61, %s62
      %p66 = pneg %p60
      %p67 = scmp.eq.s32.totalorder %s25, 1
      %p68 = por %p66, %p67
      %p69 = scmp.ne.s32.totalorder %s61, %s64
      %p70 = scmp.eq.s32.totalorder %s25, 0
      %p71 = por %p69, %p70
      %p72 = scmp.ne.s32.totalorder %s61, %s64
      %p73 = scmp.eq.s32.totalorder %s30, 1
      %p74 = por %p72, %p73
      %p75 = scmp.ne.s32.totalorder %s64, %s65
      %p76 = scmp.eq.s32.totalorder %s30, 0
      %p77 = por %p75, %p76
      %p78 = scmp.ne.s32.totalorder %s64, %s65
      %p79 = scmp.eq.s32.totalorder %s31, 1
      %p80 = por %p78, %p79
      %p82 = scmp.ne.s32.totalorder %s65, %s81
      %p83 = scmp.eq.s32.totalorder %s31, 0
      %p84 = por %p82, %p83
      %s85 = ssub.s32 %s25, %s32
      %p86 = scmp.eq.s32.totalorder %s85, 0
      %s88 = sadd.s32 %s87, 1
      %s89 = scalar_select %p86, %s87, %s88
      %p92 = pneg %p86
      %p93 = scmp.eq.s32.totalorder %s25, 1
      %p94 = por %p92, %p93
      %p95 = scmp.ne.s32.totalorder %s87, %s90
      %p96 = scmp.eq.s32.totalorder %s25, 0
      %p97 = por %p95, %p96
      %p98 = scmp.ne.s32.totalorder %s87, %s90
      %p99 = scmp.eq.s32.totalorder %s30, 1
      %p100 = por %p98, %p99
      %p101 = scmp.ne.s32.totalorder %s90, %s91
      %p102 = scmp.eq.s32.totalorder %s30, 0
      %p103 = por %p101, %p102
      %p104 = scmp.ne.s32.totalorder %s90, %s91
      %p105 = scmp.eq.s32.totalorder %s31, 1
      %p106 = por %p104, %p105
      %p108 = scmp.ne.s32.totalorder %s91, %s107
      %p109 = scmp.eq.s32.totalorder %s31, 0
      %p110 = por %p108, %p109
      %s112 = sadd.s32 %s111, 1
      %p115 = scmp.eq.s32.totalorder %s25, 1
      %p116 = scmp.ne.s32.totalorder %s111, %s113
      %p117 = scmp.eq.s32.totalorder %s25, 0
      %p118 = por %p116, %p117
      %p119 = scmp.ne.s32.totalorder %s111, %s113
      %p120 = scmp.eq.s32.totalorder %s30, 1
      %p121 = por %p119, %p120
      %p122 = scmp.ne.s32.totalorder %s113, %s114
      %p123 = scmp.eq.s32.totalorder %s30, 0
      %p124 = por %p122, %p123
      %p125 = scmp.ne.s32.totalorder %s113, %s114
      %p126 = scmp.eq.s32.totalorder %s31, 1
      %p127 = por %p125, %p126
      %p129 = scmp.ne.s32.totalorder %s114, %s128
      %p130 = scmp.eq.s32.totalorder %s31, 0
      %p131 = por %p129, %p130
      %s133 = sadd.s32 %s132, 1
      %p136 = scmp.eq.s32.totalorder %s25, 1
      %p137 = scmp.ne.s32.totalorder %s132, %s134
      %p138 = scmp.eq.s32.totalorder %s25, 0
      %p139 = por %p137, %p138
      %p140 = scmp.ne.s32.totalorder %s132, %s134
      %p141 = scmp.eq.s32.totalorder %s30, 1
      %p142 = por %p140, %p141
      %p143 = scmp.ne.s32.totalorder %s134, %s135
      %p144 = scmp.eq.s32.totalorder %s30, 0
      %p145 = por %p143, %p144
      %p146 = scmp.ne.s32.totalorder %s134, %s135
      %p147 = scmp.eq.s32.totalorder %s31, 1
      %p148 = por %p146, %p147
      %p150 = scmp.ne.s32.totalorder %s135, %s149
      %p151 = scmp.eq.s32.totalorder %s31, 0
      %p152 = por %p150, %p151
      %s154 = sadd.s32 %s153, 1
      %p157 = scmp.eq.s32.totalorder %s25, 1
      %p158 = scmp.ne.s32.totalorder %s153, %s155
      %p159 = scmp.eq.s32.totalorder %s25, 0
      %p160 = por %p158, %p159
      %p161 = scmp.ne.s32.totalorder %s153, %s155
      %p162 = scmp.eq.s32.totalorder %s30, 1
      %p163 = por %p161, %p162
      %p164 = scmp.ne.s32.totalorder %s155, %s156
      %p165 = scmp.eq.s32.totalorder %s30, 0
      %p166 = por %p164, %p165
      %p167 = scmp.ne.s32.totalorder %s155, %s156
      %p168 = scmp.eq.s32.totalorder %s31, 1
      %p169 = por %p167, %p168
      %p171 = scmp.ne.s32.totalorder %s156, %s170
      %p172 = scmp.eq.s32.totalorder %s31, 0
      %p173 = por %p171, %p172
      %s175 = sadd.s32 %s174, 1
      %p178 = scmp.eq.s32.totalorder %s25, 1
      %p179 = scmp.ne.s32.totalorder %s174, %s176
      %p180 = scmp.eq.s32.totalorder %s25, 0
      %p181 = por %p179, %p180
      %p182 = scmp.ne.s32.totalorder %s174, %s176
      %p183 = scmp.eq.s32.totalorder %s30, 1
      %p184 = por %p182, %p183
      %p185 = scmp.ne.s32.totalorder %s176, %s177
      %p186 = scmp.eq.s32.totalorder %s30, 0
      %p187 = por %p185, %p186
      %p188 = scmp.ne.s32.totalorder %s176, %s177
      %p189 = scmp.eq.s32.totalorder %s31, 1
      %p190 = por %p188, %p189
      %p192 = scmp.ne.s32.totalorder %s177, %s191
      %p193 = scmp.eq.s32.totalorder %s31, 0
      %p194 = por %p192, %p193
      %s196 = sadd.s32 %s195, 1
      %p199 = scmp.eq.s32.totalorder %s25, 1
      %p200 = scmp.ne.s32.totalorder %s195, %s197
      %p201 = scmp.eq.s32.totalorder %s25, 0
      %p202 = por %p200, %p201
      %p203 = scmp.ne.s32.totalorder %s195, %s197
      %p204 = scmp.eq.s32.totalorder %s30, 1
      %p205 = por %p203, %p204
      %p206 = scmp.ne.s32.totalorder %s197, %s198
      %p207 = scmp.eq.s32.totalorder %s30, 0
      %p208 = por %p206, %p207
      %p209 = scmp.ne.s32.totalorder %s197, %s198
      %p210 = scmp.eq.s32.totalorder %s31, 1
      %p211 = por %p209, %p210
      %p213 = scmp.ne.s32.totalorder %s198, %s212
      %p214 = scmp.eq.s32.totalorder %s31, 0
      %p215 = por %p213, %p214
      %s217 = sadd.s32 %s216, 1
      %p220 = scmp.eq.s32.totalorder %s25, 1
      %p221 = scmp.ne.s32.totalorder %s216, %s218
      %p222 = scmp.eq.s32.totalorder %s25, 0
      %p223 = por %p221, %p222
      %p224 = scmp.ne.s32.totalorder %s216, %s218
      %p225 = scmp.eq.s32.totalorder %s30, 1
      %p226 = por %p224, %p225
      %p227 = scmp.ne.s32.totalorder %s218, %s219
      %p228 = scmp.eq.s32.totalorder %s30, 0
      %p229 = por %p227, %p228
      %p230 = scmp.ne.s32.totalorder %s218, %s219
      %p231 = scmp.eq.s32.totalorder %s31, 1
      %p232 = por %p230, %p231
      %p234 = scmp.ne.s32.totalorder %s219, %s233
      %p235 = scmp.eq.s32.totalorder %s31, 0
      %p236 = por %p234, %p235
      %s238 = sadd.s32 %s237, 1
      %p241 = scmp.eq.s32.totalorder %s25, 1
      %p242 = scmp.ne.s32.totalorder %s237, %s239
      %p243 = scmp.eq.s32.totalorder %s25, 0
      %p244 = por %p242, %p243
      %p245 = scmp.ne.s32.totalorder %s237, %s239
      %p246 = scmp.eq.s32.totalorder %s30, 1
      %p247 = por %p245, %p246
      %p248 = scmp.ne.s32.totalorder %s239, %s240
      %p249 = scmp.eq.s32.totalorder %s30, 0
      %p250 = por %p248, %p249
      %p251 = scmp.ne.s32.totalorder %s239, %s240
      %p252 = scmp.eq.s32.totalorder %s31, 1
      %p253 = por %p251, %p252
      %p255 = scmp.ne.s32.totalorder %s240, %s254
      %p256 = scmp.eq.s32.totalorder %s31, 0
      %p257 = por %p255, %p256
      %s259 = sadd.s32 %s258, 1
      %p262 = scmp.eq.s32.totalorder %s25, 1
      %p263 = scmp.ne.s32.totalorder %s258, %s260
      %p264 = scmp.eq.s32.totalorder %s25, 0
      %p265 = por %p263, %p264
      %p266 = scmp.ne.s32.totalorder %s258, %s260
      %p267 = scmp.eq.s32.totalorder %s30, 1
      %p268 = por %p266, %p267
      %p269 = scmp.ne.s32.totalorder %s260, %s261
      %p270 = scmp.eq.s32.totalorder %s30, 0
      %p271 = por %p269, %p270
      %p272 = scmp.ne.s32.totalorder %s260, %s261
      %p273 = scmp.eq.s32.totalorder %s31, 1
      %p274 = por %p272, %p273
      %p276 = scmp.ne.s32.totalorder %s261, %s275
      %p277 = scmp.eq.s32.totalorder %s31, 0
      %p278 = por %p276, %p277
      %s280 = sadd.s32 %s279, 1
      %p283 = scmp.eq.s32.totalorder %s25, 1
      %p284 = scmp.ne.s32.totalorder %s279, %s281
      %p285 = scmp.eq.s32.totalorder %s25, 0
      %p286 = por %p284, %p285
      %p287 = scmp.ne.s32.totalorder %s279, %s281
      %p288 = scmp.eq.s32.totalorder %s30, 1
      %p289 = por %p287, %p288
      %p290 = scmp.ne.s32.totalorder %s281, %s282
      %p291 = scmp.eq.s32.totalorder %s30, 0
      %p292 = por %p290, %p291
      %p293 = scmp.ne.s32.totalorder %s281, %s282
      %p294 = scmp.eq.s32.totalorder %s31, 1
      %p295 = por %p293, %p294
      %p297 = scmp.ne.s32.totalorder %s282, %s296
      %p298 = scmp.eq.s32.totalorder %s31, 0
      %p299 = por %p297, %p298
      %s300 = ssub.s32 %s25, %s32
      %p301 = scmp.eq.s32.totalorder %s300, 0
      %s303 = sadd.s32 %s302, 1
      %s304 = scalar_select %p301, %s302, %s303
      %p307 = pneg %p301
      %p308 = scmp.eq.s32.totalorder %s25, 1
      %p309 = por %p307, %p308
      %p310 = scmp.ne.s32.totalorder %s302, %s305
      %p311 = scmp.eq.s32.totalorder %s25, 0
      %p312 = por %p310, %p311
      %p313 = scmp.ne.s32.totalorder %s302, %s305
      %p314 = scmp.eq.s32.totalorder %s30, 1
      %p315 = por %p313, %p314
      %p316 = scmp.ne.s32.totalorder %s305, %s306
      %p317 = scmp.eq.s32.totalorder %s30, 0
      %p318 = por %p316, %p317
      %p319 = scmp.ne.s32.totalorder %s305, %s306
      %p320 = scmp.eq.s32.totalorder %s31, 1
      %p321 = por %p319, %p320
      %p323 = scmp.ne.s32.totalorder %s306, %s322
      %p324 = scmp.eq.s32.totalorder %s31, 0
      %p325 = por %p323, %p324
      %p326 = scmp.le.s32.totalorder 1, %s25
      %p327 = scmp.lt.s32.totalorder %s25, 3
      %p328 = pnand %p326, %p327
      %p329 = pneg %p328
      // Predicated region
      $region9: #{tpu_custom_call.1} parent=5 // pred_check
        _
      $region10: #{tpu_custom_call.1} parent=5 // pred_check_branch
        %331 = sbr.rel (%p328) target = $region12
      $region11: #{tpu_custom_call.1} parent=5 // pred_region
        %s332 = ssub.s32 %s25, 1
        // Predicated region
        $region13: #{tpu_custom_call.1} parent=11 // pred_check
          %p333 = pneg %p124
        $region14: #{tpu_custom_call.1} parent=11 // pred_check_branch
          %335 = sbr.rel (%p333) target = $region16
        $region15: #{tpu_custom_call.1} parent=11 // pred_region
          _
        $region16: #{tpu_custom_call.1} parent=11 // pred_fallthru
          _
        // Predicated region
        $region17: #{tpu_custom_call.1} parent=11 // pred_check
          %p336 = pneg %p145
        $region18: #{tpu_custom_call.1} parent=11 // pred_check_branch
          %338 = sbr.rel (%p336) target = $region20
        $region19: #{tpu_custom_call.1} parent=11 // pred_region
          _
        $region20: #{tpu_custom_call.1} parent=11 // pred_fallthru
          _
        // Predicated region
        $region21: #{tpu_custom_call.1} parent=11 // pred_check
          %p339 = pneg %p166
        $region22: #{tpu_custom_call.1} parent=11 // pred_check_branch
          %341 = sbr.rel (%p339) target = $region24
        $region23: #{tpu_custom_call.1} parent=11 // pred_region
          _
        $region24: #{tpu_custom_call.1} parent=11 // pred_fallthru
          _
        // Predicated region
        $region25: #{tpu_custom_call.1} parent=11 // pred_check
          %p342 = pneg %p187
        $region26: #{tpu_custom_call.1} parent=11 // pred_check_branch
          %344 = sbr.rel (%p342) target = $region28
        $region27: #{tpu_custom_call.1} parent=11 // pred_region
          _
        $region28: #{tpu_custom_call.1} parent=11 // pred_fallthru
          _
        // Predicated region
        $region29: #{tpu_custom_call.1} parent=11 // pred_check
          %p345 = pneg %p208
        $region30: #{tpu_custom_call.1} parent=11 // pred_check_branch
          %347 = sbr.rel (%p345) target = $region32
        $region31: #{tpu_custom_call.1} parent=11 // pred_region
          _
        $region32: #{tpu_custom_call.1} parent=11 // pred_fallthru
          _
        // Predicated region
        $region33: #{tpu_custom_call.1} parent=11 // pred_check
          %p348 = pneg %p229
        $region34: #{tpu_custom_call.1} parent=11 // pred_check_branch
          %350 = sbr.rel (%p348) target = $region36
        $region35: #{tpu_custom_call.1} parent=11 // pred_region
          %s352 = ssub.s32 4096, 4096
          %353 = vsyncadd [#allocation6], %s352
          %s354 = sshll.u32 [#allocation5], 4
          %s355 = int_to_ptr.vmem [resolvable:$true] %s354
          %360 = dma.hbm_to_vmem [thread:$0]  %s8, 4096, %s355, [#allocation6], 128, 128, 8
        $region36: #{tpu_custom_call.1} parent=11 // pred_fallthru
          _
        // Predicated region
        $region37: #{tpu_custom_call.1} parent=11 // pred_check
          %p361 = pneg %p250
        $region38: #{tpu_custom_call.1} parent=11 // pred_check_branch
          %363 = sbr.rel (%p361) target = $region40
        $region39: #{tpu_custom_call.1} parent=11 // pred_region
          _
        $region40: #{tpu_custom_call.1} parent=11 // pred_fallthru
          _
        // Predicated region
        $region41: #{tpu_custom_call.1} parent=11 // pred_check
          %p364 = pneg %p271
        $region42: #{tpu_custom_call.1} parent=11 // pred_check_branch
          %366 = sbr.rel (%p364) target = $region44
        $region43: #{tpu_custom_call.1} parent=11 // pred_region
          %s368 = ssub.s32 2048, 2048
          %369 = vsyncadd [#allocation6], %s368
          %s370 = sshll.u32 [#allocation7], 4
          %s371 = int_to_ptr.vmem [resolvable:$true] %s370
          %376 = dma.hbm_to_vmem [thread:$0]  %s10, 2048, %s371, [#allocation6], 128, 128, 8
        $region44: #{tpu_custom_call.1} parent=11 // pred_fallthru
          _
        // Predicated region
        $region45: #{tpu_custom_call.1} parent=11 // pred_check
          %p377 = pneg %p292
        $region46: #{tpu_custom_call.1} parent=11 // pred_check_branch
          %379 = sbr.rel (%p377) target = $region48
        $region47: #{tpu_custom_call.1} parent=11 // pred_region
          _
        $region48: #{tpu_custom_call.1} parent=11 // pred_fallthru
          _
      $region12: #{tpu_custom_call.1} parent=5 // pred_fallthru
        _
      %p380 = scmp.lt.s32.totalorder %s25, 2
      // Predicated region
      $region49: #{tpu_custom_call.1} parent=5 // pred_check
        %p381 = pneg %p380
      $region50: #{tpu_custom_call.1} parent=5 // pred_check_branch
        %383 = sbr.rel (%p381) target = $region52
      $region51: #{tpu_custom_call.1} parent=5 // pred_region
        // Predicated region
        $region53: #{tpu_custom_call.1} parent=51 // pred_check
          %p384 = pneg %p45
        $region54: #{tpu_custom_call.1} parent=51 // pred_check_branch
          %386 = sbr.rel (%p384) target = $region56
        $region55: #{tpu_custom_call.1} parent=51 // pred_region
          %s387 = sand.u32 %s35, 1
          %s388 = scalar_lea.sflag [#allocation3], %s387
          %s389 = sand.u32 %s35, 1
          %s390 = smul.addr %s389, 64
          %s391 = scalar_lea.vmem [#allocation2], %s390
          %s393 = ssub.s32 1024, 1024
          %394 = vsyncadd %s388, %s393
          %s395 = smul.addr %s25, 16
          %s396 = smul.addr %s395, 64
          %s397 = scalar_lea.hbm %s0, %s396
          %s398 = sshll.u32 %s391, 4
          %s399 = int_to_ptr.vmem [resolvable:$true] %s398
          %404 = dma.hbm_to_vmem [thread:$0]  %s397, 1024, %s399, %s388, 64, 64, 4
        $region56: #{tpu_custom_call.1} parent=51 // pred_fallthru
          _
        // Predicated region
        $region57: #{tpu_custom_call.1} parent=51 // pred_check
          %p405 = pneg %p71
        $region58: #{tpu_custom_call.1} parent=51 // pred_check_branch
          %407 = sbr.rel (%p405) target = $region60
        $region59: #{tpu_custom_call.1} parent=51 // pred_region
          %p408 = scmp.lt.s32.totalorder %s25, 1
          %s409 = scalar_select %p408, %s25, 1
          %s410 = smul.addr %s409, 8
          %s411 = scalar_lea.vmem %s1, %s410
        $region60: #{tpu_custom_call.1} parent=51 // pred_fallthru
          _
        // Predicated region
        $region61: #{tpu_custom_call.1} parent=51 // pred_check
          %p412 = pneg %p97
        $region62: #{tpu_custom_call.1} parent=51 // pred_check_branch
          %414 = sbr.rel (%p412) target = $region64
        $region63: #{tpu_custom_call.1} parent=51 // pred_region
          %p415 = scmp.lt.s32.totalorder %s25, 1
          %s416 = scalar_select %p415, %s25, 1
          %s417 = smul.addr %s416, 16
          %s418 = smul.addr %s417, 8
          %s419 = scalar_lea.vmem %s2, %s418
        $region64: #{tpu_custom_call.1} parent=51 // pred_fallthru
          _
      $region52: #{tpu_custom_call.1} parent=5 // pred_fallthru
        _
      %p420 = scmp.le.s32.totalorder 1, %s25
      %p421 = scmp.lt.s32.totalorder %s25, 3
      %p422 = pnand %p420, %p421
      %p423 = pneg %p422
      // Predicated region
      $region65: #{tpu_custom_call.1} parent=5 // pred_check
        _
      $region66: #{tpu_custom_call.1} parent=5 // pred_check_branch
        %425 = sbr.rel (%p422) target = $region68
      $region67: #{tpu_custom_call.1} parent=5 // pred_region
        %s426 = ssub.s32 %s25, 1
        %s427 = sand.u32 %s38, 1
        %s428 = scalar_lea.sflag [#allocation3], %s427
        %s429 = sand.u32 %s38, 1
        %s430 = smul.addr %s429, 64
        %s431 = scalar_lea.vmem [#allocation2], %s430
        // Predicated region
        $region69: #{tpu_custom_call.1} parent=67 // pred_check
          %p432 = pneg %p51
        $region70: #{tpu_custom_call.1} parent=67 // pred_check_branch
          %434 = sbr.rel (%p432) target = $region72
        $region71: #{tpu_custom_call.1} parent=67 // pred_region
          %435 = dma.done %s428, 1024
        $region72: #{tpu_custom_call.1} parent=67 // pred_fallthru
          _
        // Predicated region
        $region73: #{tpu_custom_call.1} parent=67 // pred_check
          %p436 = pneg %p229
        $region74: #{tpu_custom_call.1} parent=67 // pred_check_branch
          %438 = sbr.rel (%p436) target = $region76
        $region75: #{tpu_custom_call.1} parent=67 // pred_region
          %439 = dma.done [#allocation6], 4096
        $region76: #{tpu_custom_call.1} parent=67 // pred_fallthru
          _
        // Predicated region
        $region77: #{tpu_custom_call.1} parent=67 // pred_check
          %p440 = pneg %p271
        $region78: #{tpu_custom_call.1} parent=67 // pred_check_branch
          %442 = sbr.rel (%p440) target = $region80
        $region79: #{tpu_custom_call.1} parent=67 // pred_region
          %443 = dma.done [#allocation6], 2048
        $region80: #{tpu_custom_call.1} parent=67 // pred_fallthru
          _
        %s444 = sand.u32 %s38, 1
        %s445 = scalar_lea.sflag [#allocation3], %s444
        %s446 = sand.u32 %s38, 1
        %s447 = smul.addr %s446, 64
        %s448 = scalar_lea.vmem [#allocation2], %s447
        %p449 = pneg %p51
        %p450 = pneg %p48
        %p451 = scmp.lt.s32.totalorder %s30, 1
        %s452 = scalar_select %p451, %s30, 1
        %s453 = smul.addr %s452, 8
        %s454 = scalar_lea.vmem %s1, %s453
        %p455 = pneg %p77
        %p456 = pneg %p74
        %p457 = scmp.lt.s32.totalorder %s30, 1
        %s458 = scalar_select %p457, %s30, 1
        %s459 = smul.addr %s458, 16
        %s460 = smul.addr %s459, 8
        %s461 = scalar_lea.vmem %s2, %s460
        %p462 = pneg %p103
        %p463 = pneg %p100
        %p464 = pneg %p124
        %p465 = pneg %p121
        %p466 = pneg %p145
        %p467 = pneg %p142
        %p468 = pneg %p166
        %p469 = pneg %p163
        %p470 = pneg %p187
        %p471 = pneg %p184
        %p472 = pneg %p208
        %p473 = pneg %p205
        %p474 = pneg %p229
        %p475 = pneg %p226
        %p476 = pneg %p250
        %p477 = pneg %p247
        %p478 = pneg %p271
        %p479 = pneg %p268
        %p480 = pneg %p292
        %p481 = pneg %p289
        %p482 = pneg %p318
        %p483 = pneg %p315
        %s484 = sand.u32 %s305, 1
        %s485 = scalar_lea.sflag [#allocation4], %s484
        %s486 = sand.u32 %s305, 1
        %s487 = smul.addr %s486, 8
        %s488 = scalar_lea.vmem [#allocation8], %s487
        %p489 = scmp.lt.s32.totalorder %s30, 1
        %s490 = scalar_select %p489, %s30, 1
        %s491 = smul.addr %s490, 8
        %s492 = scalar_lea.vmem %s1, %s491
        %p493 = scmp.lt.s32.totalorder %s30, 1
        %s494 = scalar_select %p493, %s30, 1
        %s495 = smul.addr %s494, 16
        %s496 = smul.addr %s495, 8
        %s497 = scalar_lea.vmem %s2, %s496
        %v499 = vld [vmem:[%s431] sm:$0xf]
        %v500 = vld [vmem:[%s431 + $0x4] sm:$0xf]
        %v501 = vld [vmem:[%s431 + $0x8] sm:$0xf]
        %v502 = vld [vmem:[%s431 + $0xc] sm:$0xf]
        %v503 = vld [vmem:[%s431 + $0x10] sm:$0xf]
        %v504 = vld [vmem:[%s431 + $0x14] sm:$0xf]
        %v505 = vld [vmem:[%s431 + $0x18] sm:$0xf]
        %v506 = vld [vmem:[%s431 + $0x1c] sm:$0xf]
        %v507 = vld [vmem:[%s431 + $0x20] sm:$0xf]
        %v508 = vld [vmem:[%s431 + $0x24] sm:$0xf]
        %v509 = vld [vmem:[%s431 + $0x28] sm:$0xf]
        %v510 = vld [vmem:[%s431 + $0x2c] sm:$0xf]
        %v511 = vld [vmem:[%s431 + $0x30] sm:$0xf]
        %v512 = vld [vmem:[%s431 + $0x34] sm:$0xf]
        %v513 = vld [vmem:[%s431 + $0x38] sm:$0xf]
        %v514 = vld [vmem:[%s431 + $0x3c] sm:$0xf]
        %v515 = vld [vmem:[%s497] sm:$0xff]
        %v516 = vld [vmem:[%s497 + $0x8] sm:$0xff]
        %v517 = vld [vmem:[%s497 + $0x10] sm:$0xff]
        %v518 = vld [vmem:[%s497 + $0x18] sm:$0xff]
        %v519 = vld [vmem:[%s497 + $0x20] sm:$0xff]
        %v520 = vld [vmem:[%s497 + $0x28] sm:$0xff]
        %v521 = vld [vmem:[%s497 + $0x30] sm:$0xff]
        %v522 = vld [vmem:[%s497 + $0x38] sm:$0xff]
        %v523 = vld [vmem:[%s497 + $0x40] sm:$0xff]
        %v524 = vld [vmem:[%s497 + $0x48] sm:$0xff]
        %v525 = vld [vmem:[%s497 + $0x50] sm:$0xff]
        %v526 = vld [vmem:[%s497 + $0x58] sm:$0xff]
        %v527 = vld [vmem:[%s497 + $0x60] sm:$0xff]
        %v528 = vld [vmem:[%s497 + $0x68] sm:$0xff]
        %v529 = vld [vmem:[%s497 + $0x70] sm:$0xff]
        %v530 = vld [vmem:[%s497 + $0x78] sm:$0xff]
        %v531 = vpack.c.bf16 %v516, %v515
        %v532 = vpack.c.bf16 %v518, %v517
        %v533 = vpack.c.bf16 %v520, %v519
        %v534 = vpack.c.bf16 %v522, %v521
        %v535 = vpack.c.bf16 %v524, %v523
        %v536 = vpack.c.bf16 %v526, %v525
        %v537 = vpack.c.bf16 %v528, %v527
        %v538 = vpack.c.bf16 %v530, %v529
        %v555 = vunpack.c.l.b16 %v499
        %v556 = vunpack.c.l.b16 %v500
        %v557 = vunpack.c.l.b16 %v501
        %v558 = vunpack.c.l.b16 %v502
        %v559 = vunpack.c.l.b16 %v503
        %v560 = vunpack.c.l.b16 %v504
        %v561 = vunpack.c.l.b16 %v505
        %v562 = vunpack.c.l.b16 %v506
        %v563 = vunpack.c.l.b16 %v507
        %v564 = vunpack.c.l.b16 %v508
        %v565 = vunpack.c.l.b16 %v509
        %v566 = vunpack.c.l.b16 %v510
        %v567 = vunpack.c.l.b16 %v511
        %v568 = vunpack.c.l.b16 %v512
        %v569 = vunpack.c.l.b16 %v513
        %v570 = vunpack.c.l.b16 %v514
        %v571 = vpack.c.b16 %v556, %v555
        %v572 = vpack.c.b16 %v558, %v557
        %v573 = vpack.c.b16 %v560, %v559
        %v574 = vpack.c.b16 %v562, %v561
        %v575 = vpack.c.b16 %v564, %v563
        %v576 = vpack.c.b16 %v566, %v565
        %v577 = vpack.c.b16 %v568, %v567
        %v578 = vpack.c.b16 %v570, %v569
        %587 = vmatprep.subr.bf16.mxu0 0
        %588 = vmatpush1.bf16.msra.mxu0 %v531
        %589 = vmatprep.subr.bf16.mxu0 0
        %590 = vmatpush1.bf16.msra.mxu0 %v532
        %591 = vmatprep.subr.bf16.mxu0 0
        %592 = vmatpush1.bf16.msra.mxu0 %v533
        %593 = vmatprep.subr.bf16.mxu0 0
        %594 = vmatpush1.bf16.msra.mxu0 %v534
        %595 = vmatprep.subr.bf16.mxu0 0
        %596 = vmatpush1.bf16.msra.mxu0 %v535
        %597 = vmatprep.subr.bf16.mxu0 0
        %598 = vmatpush1.bf16.msra.mxu0 %v536
        %599 = vmatprep.subr.bf16.mxu0 0
        %600 = vmatpush1.bf16.msra.mxu0 %v537
        %601 = vmatprep.subr.bf16.mxu0 0
        %602 = vmatpush1.bf16.msra.mxu0 %v538
        %603 = vmatprep.subr.bf16.mxu0 0
        %604 = vmatpush1.bf16.msra.mxu0 0
        %605 = vmatprep.subr.bf16.mxu0 0
        %606 = vmatpush1.bf16.msra.mxu0 0
        %607 = vmatprep.subr.bf16.mxu0 0
        %608 = vmatpush1.bf16.msra.mxu0 0
        %609 = vmatprep.subr.bf16.mxu0 0
        %610 = vmatpush1.bf16.msra.mxu0 0
        %611 = vmatprep.subr.bf16.mxu0 0
        %612 = vmatpush1.bf16.msra.mxu0 0
        %613 = vmatprep.subr.bf16.mxu0 0
        %614 = vmatpush1.bf16.msra.mxu0 0
        %615 = vmatprep.subr.bf16.mxu0 0
        %616 = vmatpush1.bf16.msra.mxu0 0
        %617 = vmatprep.subr.bf16.mxu0 0
        %618 = vmatpush1.bf16.msra.mxu0 0
        %619 = vmatprep.mubr.bf16.mxu0 0
        %620 = vmatmul.mubr.bf16.gmra.mrb[0].mxu0 %v571
        %v621 = vpop.f32.mrb[0].mxu0
        %v622 = vadd.f32 0.0, %v621
        %v623 = vpop.f32.mrb[0].mxu0
        %v624 = vpop.f32.mrb[0].mxu0
        %v625 = vadd.f32 0.0, %v624
        %v626 = vpop.f32.mrb[0].mxu0
        %627 = vmatprep.mubr.bf16.mxu0 0
        %628 = vmatmul.mubr.bf16.gmra.mrb[0].mxu0 %v572
        %v629 = vpop.f32.mrb[0].mxu0
        %v630 = vadd.f32 0.0, %v629
        %v631 = vpop.f32.mrb[0].mxu0
        %v632 = vpop.f32.mrb[0].mxu0
        %v633 = vadd.f32 0.0, %v632
        %v634 = vpop.f32.mrb[0].mxu0
        %635 = vmatprep.mubr.bf16.mxu0 0
        %636 = vmatmul.mubr.bf16.gmra.mrb[0].mxu0 %v573
        %v637 = vpop.f32.mrb[0].mxu0
        %v638 = vadd.f32 0.0, %v637
        %v639 = vpop.f32.mrb[0].mxu0
        %v640 = vpop.f32.mrb[0].mxu0
        %v641 = vadd.f32 0.0, %v640
        %v642 = vpop.f32.mrb[0].mxu0
        %643 = vmatprep.mubr.bf16.mxu0 0
        %644 = vmatmul.mubr.bf16.gmra.mrb[0].mxu0 %v574
        %v645 = vpop.f32.mrb[0].mxu0
        %v646 = vadd.f32 0.0, %v645
        %v647 = vpop.f32.mrb[0].mxu0
        %v648 = vpop.f32.mrb[0].mxu0
        %v649 = vadd.f32 0.0, %v648
        %v650 = vpop.f32.mrb[0].mxu0
        %651 = vmatprep.mubr.bf16.mxu0 0
        %652 = vmatmul.mubr.bf16.gmra.mrb[0].mxu0 %v575
        %v653 = vpop.f32.mrb[0].mxu0
        %v654 = vadd.f32 0.0, %v653
        %v655 = vpop.f32.mrb[0].mxu0
        %v656 = vpop.f32.mrb[0].mxu0
        %v657 = vadd.f32 0.0, %v656
        %v658 = vpop.f32.mrb[0].mxu0
        %659 = vmatprep.mubr.bf16.mxu0 0
        %660 = vmatmul.mubr.bf16.gmra.mrb[0].mxu0 %v576
        %v661 = vpop.f32.mrb[0].mxu0
        %v662 = vadd.f32 0.0, %v661
        %v663 = vpop.f32.mrb[0].mxu0
        %v664 = vpop.f32.mrb[0].mxu0
        %v665 = vadd.f32 0.0, %v664
        %v666 = vpop.f32.mrb[0].mxu0
        %667 = vmatprep.mubr.bf16.mxu0 0
        %668 = vmatmul.mubr.bf16.gmra.mrb[0].mxu0 %v577
        %v669 = vpop.f32.mrb[0].mxu0
        %v670 = vadd.f32 0.0, %v669
        %v671 = vpop.f32.mrb[0].mxu0
        %v672 = vpop.f32.mrb[0].mxu0
        %v673 = vadd.f32 0.0, %v672
        %v674 = vpop.f32.mrb[0].mxu0
        %675 = vmatprep.mubr.bf16.mxu0 0
        %676 = vmatmul.mubr.bf16.gmra.mrb[0].mxu0 %v578
        %v677 = vpop.f32.mrb[0].mxu0
        %v678 = vadd.f32 0.0, %v677
        %v679 = vpop.f32.mrb[0].mxu0
        %v680 = vpop.f32.mrb[0].mxu0
        %v681 = vadd.f32 0.0, %v680
        %v682 = vpop.f32.mrb[0].mxu0
        %683 = vdwg.mxu0
        %v684 = vld [vmem:[%s3] sm:$0x1]
        %686 = vset.pattern.permute.xlu0 0
        %687 = vperm.xlu0 %686, %v622
        %v688 = vpop.permute.xlu0 %687
        %691 = vset.pattern.permute.xlu0 0
        %692 = vperm.xlu0 %691, %v625
        %v693 = vpop.permute.xlu0 %692
        %696 = vset.pattern.permute.xlu0 0
        %697 = vperm.xlu0 %696, %v630
        %v698 = vpop.permute.xlu0 %697
        %701 = vset.pattern.permute.xlu0 0
        %702 = vperm.xlu0 %701, %v633
        %v703 = vpop.permute.xlu0 %702
        %706 = vset.pattern.permute.xlu0 0
        %707 = vperm.xlu0 %706, %v638
        %v708 = vpop.permute.xlu0 %707
        %711 = vset.pattern.permute.xlu0 0
        %712 = vperm.xlu0 %711, %v641
        %v713 = vpop.permute.xlu0 %712
        %716 = vset.pattern.permute.xlu0 0
        %717 = vperm.xlu0 %716, %v646
        %v718 = vpop.permute.xlu0 %717
        %721 = vset.pattern.permute.xlu0 0
        %722 = vperm.xlu0 %721, %v649
        %v723 = vpop.permute.xlu0 %722
        %726 = vset.pattern.permute.xlu0 0
        %727 = vperm.xlu0 %726, %v654
        %v728 = vpop.permute.xlu0 %727
        %731 = vset.pattern.permute.xlu0 0
        %732 = vperm.xlu0 %731, %v657
        %v733 = vpop.permute.xlu0 %732
        %736 = vset.pattern.permute.xlu0 0
        %737 = vperm.xlu0 %736, %v662
        %v738 = vpop.permute.xlu0 %737
        %741 = vset.pattern.permute.xlu0 0
        %742 = vperm.xlu0 %741, %v665
        %v743 = vpop.permute.xlu0 %742
        %746 = vset.pattern.permute.xlu0 0
        %747 = vperm.xlu0 %746, %v670
        %v748 = vpop.permute.xlu0 %747
        %751 = vset.pattern.permute.xlu0 0
        %752 = vperm.xlu0 %751, %v673
        %v753 = vpop.permute.xlu0 %752
        %756 = vset.pattern.permute.xlu0 0
        %757 = vperm.xlu0 %756, %v678
        %v758 = vpop.permute.xlu0 %757
        %761 = vset.pattern.permute.xlu0 0
        %762 = vperm.xlu0 %761, %v681
        %v763 = vpop.permute.xlu0 %762
        %v766 = vlaneseq
        %v767 = vshrl.u32 %v766, 7
        %v768 = vsub.s32 0, %v767
        %v769 = vrot.slane %v684, %v768
        %v771 = vmul.f32 %v688, %v769
        %v772 = vmul.f32 %v693, %v769
        %v773 = vmul.f32 %v698, %v769
        %v774 = vmul.f32 %v703, %v769
        %v775 = vmul.f32 %v708, %v769
        %v776 = vmul.f32 %v713, %v769
        %v777 = vmul.f32 %v718, %v769
        %v778 = vmul.f32 %v723, %v769
        %v779 = vmul.f32 %v728, %v769
        %v780 = vmul.f32 %v733, %v769
        %v781 = vmul.f32 %v738, %v769
        %v782 = vmul.f32 %v743, %v769
        %v783 = vmul.f32 %v748, %v769
        %v784 = vmul.f32 %v753, %v769
        %v785 = vmul.f32 %v758, %v769
        %v786 = vmul.f32 %v763, %v769
        %v787 = vld [vmem:[%s4] sm:$0x1]
        %789 = vset.pattern.permute.xlu0 0
        %790 = vperm.xlu0 %789, %v515
        %v791 = vpop.permute.xlu0 %790
        %794 = vset.pattern.permute.xlu0 0
        %795 = vperm.xlu0 %794, %v516
        %v796 = vpop.permute.xlu0 %795
        %799 = vset.pattern.permute.xlu0 0
        %800 = vperm.xlu0 %799, %v517
        %v801 = vpop.permute.xlu0 %800
        %804 = vset.pattern.permute.xlu0 0
        %805 = vperm.xlu0 %804, %v518
        %v806 = vpop.permute.xlu0 %805
        %809 = vset.pattern.permute.xlu0 0
        %810 = vperm.xlu0 %809, %v519
        %v811 = vpop.permute.xlu0 %810
        %814 = vset.pattern.permute.xlu0 0
        %815 = vperm.xlu0 %814, %v520
        %v816 = vpop.permute.xlu0 %815
        %819 = vset.pattern.permute.xlu0 0
        %820 = vperm.xlu0 %819, %v521
        %v821 = vpop.permute.xlu0 %820
        %824 = vset.pattern.permute.xlu0 0
        %825 = vperm.xlu0 %824, %v522
        %v826 = vpop.permute.xlu0 %825
        %829 = vset.pattern.permute.xlu0 0
        %830 = vperm.xlu0 %829, %v523
        %v831 = vpop.permute.xlu0 %830
        %834 = vset.pattern.permute.xlu0 0
        %835 = vperm.xlu0 %834, %v524
        %v836 = vpop.permute.xlu0 %835
        %839 = vset.pattern.permute.xlu0 0
        %840 = vperm.xlu0 %839, %v525
        %v841 = vpop.permute.xlu0 %840
        %844 = vset.pattern.permute.xlu0 0
        %845 = vperm.xlu0 %844, %v526
        %v846 = vpop.permute.xlu0 %845
        %849 = vset.pattern.permute.xlu0 0
        %850 = vperm.xlu0 %849, %v527
        %v851 = vpop.permute.xlu0 %850
        %854 = vset.pattern.permute.xlu0 0
        %855 = vperm.xlu0 %854, %v528
        %v856 = vpop.permute.xlu0 %855
        %859 = vset.pattern.permute.xlu0 0
        %860 = vperm.xlu0 %859, %v529
        %v861 = vpop.permute.xlu0 %860
        %864 = vset.pattern.permute.xlu0 0
        %865 = vperm.xlu0 %864, %v530
        %v866 = vpop.permute.xlu0 %865
        %v869 = vlaneseq
        %v870 = vshrl.u32 %v869, 7
        %v871 = vsub.s32 0, %v870
        %v872 = vrot.slane %v787, %v871
        %v874 = vmul.f32 %v791, %v872
        %v875 = vmul.f32 %v796, %v872
        %v876 = vmul.f32 %v801, %v872
        %v877 = vmul.f32 %v806, %v872
        %v878 = vmul.f32 %v811, %v872
        %v879 = vmul.f32 %v816, %v872
        %v880 = vmul.f32 %v821, %v872
        %v881 = vmul.f32 %v826, %v872
        %v882 = vmul.f32 %v831, %v872
        %v883 = vmul.f32 %v836, %v872
        %v884 = vmul.f32 %v841, %v872
        %v885 = vmul.f32 %v846, %v872
        %v886 = vmul.f32 %v851, %v872
        %v887 = vmul.f32 %v856, %v872
        %v888 = vmul.f32 %v861, %v872
        %v889 = vmul.f32 %v866, %v872
        %v890 = vadd.f32 %v771, %v874
        %v891 = vadd.f32 %v772, %v875
        %v892 = vadd.f32 %v773, %v876
        %v893 = vadd.f32 %v774, %v877
        %v894 = vadd.f32 %v775, %v878
        %v895 = vadd.f32 %v776, %v879
        %v896 = vadd.f32 %v777, %v880
        %v897 = vadd.f32 %v778, %v881
        %v898 = vadd.f32 %v779, %v882
        %v899 = vadd.f32 %v780, %v883
        %v900 = vadd.f32 %v781, %v884
        %v901 = vadd.f32 %v782, %v885
        %v902 = vadd.f32 %v783, %v886
        %v903 = vadd.f32 %v784, %v887
        %v904 = vadd.f32 %v785, %v888
        %v905 = vadd.f32 %v786, %v889
        %v906 = vld [vmem:[%s5] sm:$0x1]
        %v908 = vlaneseq
        %v909 = vshrl.u32 %v908, 7
        %v910 = vsub.s32 0, %v909
        %v911 = vrot.slane %v906, %v910
        %v913 = vadd.f32 %v890, %v911
        %v914 = vadd.f32 %v891, %v911
        %v915 = vadd.f32 %v892, %v911
        %v916 = vadd.f32 %v893, %v911
        %v917 = vadd.f32 %v894, %v911
        %v918 = vadd.f32 %v895, %v911
        %v919 = vadd.f32 %v896, %v911
        %v920 = vadd.f32 %v897, %v911
        %v921 = vadd.f32 %v898, %v911
        %v922 = vadd.f32 %v899, %v911
        %v923 = vadd.f32 %v900, %v911
        %v924 = vadd.f32 %v901, %v911
        %v925 = vadd.f32 %v902, %v911
        %v926 = vadd.f32 %v903, %v911
        %v927 = vadd.f32 %v904, %v911
        %v928 = vadd.f32 %v905, %v911
        %v929 = vmax.f32 %v913, 0.0
        %v930 = vmax.f32 %v914, 0.0
        %v931 = vmax.f32 %v915, 0.0
        %v932 = vmax.f32 %v916, 0.0
        %v933 = vmax.f32 %v917, 0.0
        %v934 = vmax.f32 %v918, 0.0
        %v935 = vmax.f32 %v919, 0.0
        %v936 = vmax.f32 %v920, 0.0
        %v937 = vmax.f32 %v921, 0.0
        %v938 = vmax.f32 %v922, 0.0
        %v939 = vmax.f32 %v923, 0.0
        %v940 = vmax.f32 %v924, 0.0
        %v941 = vmax.f32 %v925, 0.0
        %v942 = vmax.f32 %v926, 0.0
        %v943 = vmax.f32 %v927, 0.0
        %v944 = vmax.f32 %v928, 0.0
        %v945 = vld [vmem:[%s6] sm:$0xff]
        %v946 = vld [vmem:[%s6 + $0x8] sm:$0xff]
        %v947 = vld [vmem:[%s6 + $0x10] sm:$0xff]
        %v948 = vld [vmem:[%s6 + $0x18] sm:$0xff]
        %v949 = vld [vmem:[%s6 + $0x20] sm:$0xff]
        %v950 = vld [vmem:[%s6 + $0x28] sm:$0xff]
        %v951 = vld [vmem:[%s6 + $0x30] sm:$0xff]
        %v952 = vld [vmem:[%s6 + $0x38] sm:$0xff]
        %v953 = vld [vmem:[%s6 + $0x40] sm:$0xff]
        %v954 = vld [vmem:[%s6 + $0x48] sm:$0xff]
        %v955 = vld [vmem:[%s6 + $0x50] sm:$0xff]
        %v956 = vld [vmem:[%s6 + $0x58] sm:$0xff]
        %v957 = vld [vmem:[%s6 + $0x60] sm:$0xff]
        %v958 = vld [vmem:[%s6 + $0x68] sm:$0xff]
        %v959 = vld [vmem:[%s6 + $0x70] sm:$0xff]
        %v960 = vld [vmem:[%s6 + $0x78] sm:$0xff]
        %v961 = vld [vmem:[%s6 + $0x80] sm:$0xff]
        %v962 = vld [vmem:[%s6 + $0x88] sm:$0xff]
        %v963 = vld [vmem:[%s6 + $0x90] sm:$0xff]
        %v964 = vld [vmem:[%s6 + $0x98] sm:$0xff]
        %v965 = vld [vmem:[%s6 + $0xa0] sm:$0xff]
        %v966 = vld [vmem:[%s6 + $0xa8] sm:$0xff]
        %v967 = vld [vmem:[%s6 + $0xb0] sm:$0xff]
        %v968 = vld [vmem:[%s6 + $0xb8] sm:$0xff]
        %v969 = vld [vmem:[%s6 + $0xc0] sm:$0xff]
        %v970 = vld [vmem:[%s6 + $0xc8] sm:$0xff]
        %v971 = vld [vmem:[%s6 + $0xd0] sm:$0xff]
        %v972 = vld [vmem:[%s6 + $0xd8] sm:$0xff]
        %v973 = vld [vmem:[%s6 + $0xe0] sm:$0xff]
        %v974 = vld [vmem:[%s6 + $0xe8] sm:$0xff]
        %v975 = vld [vmem:[%s6 + $0xf0] sm:$0xff]
        %v976 = vld [vmem:[%s6 + $0xf8] sm:$0xff]
        %v977 = vld [vmem:[%s7] sm:$0x1]
        %v978 = vpack.c.bf16 %v930, %v929
        %v979 = vpack.c.bf16 %v932, %v931
        %v980 = vpack.c.bf16 %v934, %v933
        %v981 = vpack.c.bf16 %v936, %v935
        %v982 = vpack.c.bf16 %v938, %v937
        %v983 = vpack.c.bf16 %v940, %v939
        %v984 = vpack.c.bf16 %v942, %v941
        %v985 = vpack.c.bf16 %v944, %v943
        %986 = vmatprep.subr.bf16.mxu0 0
        %987 = vmatpush1.bf16.msra.mxu0 %v978
        %988 = vmatprep.subr.bf16.mxu0 0
        %989 = vmatpush1.bf16.msra.mxu0 %v979
        %990 = vmatprep.subr.bf16.mxu0 0
        %991 = vmatpush1.bf16.msra.mxu0 %v980
        %992 = vmatprep.subr.bf16.mxu0 0
        %993 = vmatpush1.bf16.msra.mxu0 %v981
        %994 = vmatprep.subr.bf16.mxu0 0
        %995 = vmatpush1.bf16.msra.mxu0 %v982
        %996 = vmatprep.subr.bf16.mxu0 0
        %997 = vmatpush1.bf16.msra.mxu0 %v983
        %998 = vmatprep.subr.bf16.mxu0 0
        %999 = vmatpush1.bf16.msra.mxu0 %v984
        %1000 = vmatprep.subr.bf16.mxu0 0
        %1001 = vmatpush1.bf16.msra.mxu0 %v985
        %1002 = vmatprep.subr.bf16.mxu0 0
        %1003 = vmatpush1.bf16.msra.mxu0 0
        %1004 = vmatprep.subr.bf16.mxu0 0
        %1005 = vmatpush1.bf16.msra.mxu0 0
        %1006 = vmatprep.subr.bf16.mxu0 0
        %1007 = vmatpush1.bf16.msra.mxu0 0
        %1008 = vmatprep.subr.bf16.mxu0 0
        %1009 = vmatpush1.bf16.msra.mxu0 0
        %1010 = vmatprep.subr.bf16.mxu0 0
        %1011 = vmatpush1.bf16.msra.mxu0 0
        %1012 = vmatprep.subr.bf16.mxu0 0
        %1013 = vmatpush1.bf16.msra.mxu0 0
        %1014 = vmatprep.subr.bf16.mxu0 0
        %1015 = vmatpush1.bf16.msra.mxu0 0
        %1016 = vmatprep.subr.bf16.mxu0 0
        %1017 = vmatpush1.bf16.msra.mxu0 0
        %1018 = vmatprep.mubr.bf16.mxu0 0
        %1019 = vmatmul.mubr.bf16.gmra.mrb[0].mxu0 %v571
        %v1020 = vpop.f32.mrb[0].mxu0
        %v1021 = vadd.f32 0.0, %v1020
        %v1022 = vpop.f32.mrb[0].mxu0
        %v1023 = vpop.f32.mrb[0].mxu0
        %v1024 = vadd.f32 0.0, %v1023
        %v1025 = vpop.f32.mrb[0].mxu0
        %1026 = vmatprep.mubr.bf16.mxu0 0
        %1027 = vmatmul.mubr.bf16.gmra.mrb[0].mxu0 %v572
        %v1028 = vpop.f32.mrb[0].mxu0
        %v1029 = vadd.f32 0.0, %v1028
        %v1030 = vpop.f32.mrb[0].mxu0
        %v1031 = vpop.f32.mrb[0].mxu0
        %v1032 = vadd.f32 0.0, %v1031
        %v1033 = vpop.f32.mrb[0].mxu0
        %1034 = vmatprep.mubr.bf16.mxu0 0
        %1035 = vmatmul.mubr.bf16.gmra.mrb[0].mxu0 %v573
        %v1036 = vpop.f32.mrb[0].mxu0
        %v1037 = vadd.f32 0.0, %v1036
        %v1038 = vpop.f32.mrb[0].mxu0
        %v1039 = vpop.f32.mrb[0].mxu0
        %v1040 = vadd.f32 0.0, %v1039
        %v1041 = vpop.f32.mrb[0].mxu0
        %1042 = vmatprep.mubr.bf16.mxu0 0
        %1043 = vmatmul.mubr.bf16.gmra.mrb[0].mxu0 %v574
        %v1044 = vpop.f32.mrb[0].mxu0
        %v1045 = vadd.f32 0.0, %v1044
        %v1046 = vpop.f32.mrb[0].mxu0
        %v1047 = vpop.f32.mrb[0].mxu0
        %v1048 = vadd.f32 0.0, %v1047
        %v1049 = vpop.f32.mrb[0].mxu0
        %1050 = vmatprep.mubr.bf16.mxu0 0
        %1051 = vmatmul.mubr.bf16.gmra.mrb[0].mxu0 %v575
        %v1052 = vpop.f32.mrb[0].mxu0
        %v1053 = vadd.f32 0.0, %v1052
        %v1054 = vpop.f32.mrb[0].mxu0
        %v1055 = vpop.f32.mrb[0].mxu0
        %v1056 = vadd.f32 0.0, %v1055
        %v1057 = vpop.f32.mrb[0].mxu0
        %1058 = vmatprep.mubr.bf16.mxu0 0
        %1059 = vmatmul.mubr.bf16.gmra.mrb[0].mxu0 %v576
        %v1060 = vpop.f32.mrb[0].mxu0
        %v1061 = vadd.f32 0.0, %v1060
        %v1062 = vpop.f32.mrb[0].mxu0
        %v1063 = vpop.f32.mrb[0].mxu0
        %v1064 = vadd.f32 0.0, %v1063
        %v1065 = vpop.f32.mrb[0].mxu0
        %1066 = vmatprep.mubr.bf16.mxu0 0
        %1067 = vmatmul.mubr.bf16.gmra.mrb[0].mxu0 %v577
        %v1068 = vpop.f32.mrb[0].mxu0
        %v1069 = vadd.f32 0.0, %v1068
        %v1070 = vpop.f32.mrb[0].mxu0
        %v1071 = vpop.f32.mrb[0].mxu0
        %v1072 = vadd.f32 0.0, %v1071
        %v1073 = vpop.f32.mrb[0].mxu0
        %1074 = vmatprep.mubr.bf16.mxu0 0
        %1075 = vmatmul.mubr.bf16.gmra.mrb[0].mxu0 %v578
        %v1076 = vpop.f32.mrb[0].mxu0
        %v1077 = vadd.f32 0.0, %v1076
        %v1078 = vpop.f32.mrb[0].mxu0
        %v1079 = vpop.f32.mrb[0].mxu0
        %v1080 = vadd.f32 0.0, %v1079
        %v1081 = vpop.f32.mrb[0].mxu0
        %1082 = vdwg.mxu0
        %v1084 = vlaneseq
        %v1085 = vshrl.u32 %v1084, 7
        %v1086 = vsub.s32 0, %v1085
        %v1087 = vrot.slane %v977, %v1086
        %1089 = vmatprep.subr.mxu0 0.0
        %1090 = vmatpush1.msra.mxu0 %v945
        %1091 = vmatprep.subr.mxu0 0.0
        %1092 = vmatpush1.msra.mxu0 %v946
        %1093 = vmatprep.subr.mxu0 0.0
        %1094 = vmatpush1.msra.mxu0 %v947
        %1095 = vmatprep.subr.mxu0 0.0
        %1096 = vmatpush1.msra.mxu0 %v948
        %1097 = vmatprep.subr.mxu0 0.0
        %1098 = vmatpush1.msra.mxu0 %v949
        %1099 = vmatprep.subr.mxu0 0.0
        %1100 = vmatpush1.msra.mxu0 %v950
        %1101 = vmatprep.subr.mxu0 0.0
        %1102 = vmatpush1.msra.mxu0 %v951
        %1103 = vmatprep.subr.mxu0 0.0
        %1104 = vmatpush1.msra.mxu0 %v952
        %1105 = vmatprep.subr.mxu0 0.0
        %1106 = vmatpush1.msra.mxu0 %v953
        %1107 = vmatprep.subr.mxu0 0.0
        %1108 = vmatpush1.msra.mxu0 %v954
        %1109 = vmatprep.subr.mxu0 0.0
        %1110 = vmatpush1.msra.mxu0 %v955
        %1111 = vmatprep.subr.mxu0 0.0
        %1112 = vmatpush1.msra.mxu0 %v956
        %1113 = vmatprep.subr.mxu0 0.0
        %1114 = vmatpush1.msra.mxu0 %v957
        %1115 = vmatprep.subr.mxu0 0.0
        %1116 = vmatpush1.msra.mxu0 %v958
        %1117 = vmatprep.subr.mxu0 0.0
        %1118 = vmatpush1.msra.mxu0 %v959
        %1119 = vmatprep.subr.mxu0 0.0
        %1120 = vmatpush1.msra.mxu0 %v960
        %1121 = vmatprep.subr.mxu0 0.0
        %1122 = vmatpush1.msra.mxu0 %v961
        %1123 = vmatprep.subr.mxu0 0.0
        %1124 = vmatpush1.msra.mxu0 %v962
        %1125 = vmatprep.subr.mxu0 0.0
        %1126 = vmatpush1.msra.mxu0 %v963
        %1127 = vmatprep.subr.mxu0 0.0
        %1128 = vmatpush1.msra.mxu0 %v964
        %1129 = vmatprep.subr.mxu0 0.0
        %1130 = vmatpush1.msra.mxu0 %v965
        %1131 = vmatprep.subr.mxu0 0.0
        %1132 = vmatpush1.msra.mxu0 %v966
        %1133 = vmatprep.subr.mxu0 0.0
        %1134 = vmatpush1.msra.mxu0 %v967
        %1135 = vmatprep.subr.mxu0 0.0
        %1136 = vmatpush1.msra.mxu0 %v968
        %1137 = vmatprep.subr.mxu0 0.0
        %1138 = vmatpush1.msra.mxu0 %v969
        %1139 = vmatprep.subr.mxu0 0.0
        %1140 = vmatpush1.msra.mxu0 %v970
        %1141 = vmatprep.subr.mxu0 0.0
        %1142 = vmatpush1.msra.mxu0 %v971
        %1143 = vmatprep.subr.mxu0 0.0
        %1144 = vmatpush1.msra.mxu0 %v972
        %1145 = vmatprep.subr.mxu0 0.0
        %1146 = vmatpush1.msra.mxu0 %v973
        %1147 = vmatprep.subr.mxu0 0.0
        %1148 = vmatpush1.msra.mxu0 %v974
        %1149 = vmatprep.subr.mxu0 0.0
        %1150 = vmatpush1.msra.mxu0 %v975
        %1151 = vmatprep.subr.mxu0 0.0
        %1152 = vmatpush1.msra.mxu0 %v976
        %1153 = vmatprep.mubr.f32.mxu0 %v929
        %1154 = vmatmul.mubr.f32.gmra.mrb[0].mxu0 %v1021
        %v1155 = vpop.f32.mrb[0].mxu0
        %v1156 = vadd.f32 %v1087, %v1155
        %v1157 = vpop.f32.mrb[0].mxu0
        %1158 = vmatprep.mubr.f32.mxu0 %v930
        %1159 = vmatmul.mubr.f32.gmra.mrb[0].mxu0 %v1024
        %v1160 = vpop.f32.mrb[0].mxu0
        %v1161 = vadd.f32 %v1087, %v1160
        %v1162 = vpop.f32.mrb[0].mxu0
        %1163 = vmatprep.mubr.f32.mxu0 %v931
        %1164 = vmatmul.mubr.f32.gmra.mrb[0].mxu0 %v1029
        %v1165 = vpop.f32.mrb[0].mxu0
        %v1166 = vadd.f32 %v1087, %v1165
        %v1167 = vpop.f32.mrb[0].mxu0
        %1168 = vmatprep.mubr.f32.mxu0 %v932
        %1169 = vmatmul.mubr.f32.gmra.mrb[0].mxu0 %v1032
        %v1170 = vpop.f32.mrb[0].mxu0
        %v1171 = vadd.f32 %v1087, %v1170
        %v1172 = vpop.f32.mrb[0].mxu0
        %1173 = vmatprep.mubr.f32.mxu0 %v933
        %1174 = vmatmul.mubr.f32.gmra.mrb[0].mxu0 %v1037
        %v1175 = vpop.f32.mrb[0].mxu0
        %v1176 = vadd.f32 %v1087, %v1175
        %v1177 = vpop.f32.mrb[0].mxu0
        %1178 = vmatprep.mubr.f32.mxu0 %v934
        %1179 = vmatmul.mubr.f32.gmra.mrb[0].mxu0 %v1040
        %v1180 = vpop.f32.mrb[0].mxu0
        %v1181 = vadd.f32 %v1087, %v1180
        %v1182 = vpop.f32.mrb[0].mxu0
        %1183 = vmatprep.mubr.f32.mxu0 %v935
        %1184 = vmatmul.mubr.f32.gmra.mrb[0].mxu0 %v1045
        %v1185 = vpop.f32.mrb[0].mxu0
        %v1186 = vadd.f32 %v1087, %v1185
        %v1187 = vpop.f32.mrb[0].mxu0
        %1188 = vmatprep.mubr.f32.mxu0 %v936
        %1189 = vmatmul.mubr.f32.gmra.mrb[0].mxu0 %v1048
        %v1190 = vpop.f32.mrb[0].mxu0
        %v1191 = vadd.f32 %v1087, %v1190
        %v1192 = vpop.f32.mrb[0].mxu0
        %1193 = vmatprep.mubr.f32.mxu0 %v937
        %1194 = vmatmul.mubr.f32.gmra.mrb[0].mxu0 %v1053
        %v1195 = vpop.f32.mrb[0].mxu0
        %v1196 = vadd.f32 %v1087, %v1195
        %v1197 = vpop.f32.mrb[0].mxu0
        %1198 = vmatprep.mubr.f32.mxu0 %v938
        %1199 = vmatmul.mubr.f32.gmra.mrb[0].mxu0 %v1056
        %v1200 = vpop.f32.mrb[0].mxu0
        %v1201 = vadd.f32 %v1087, %v1200
        %v1202 = vpop.f32.mrb[0].mxu0
        %1203 = vmatprep.mubr.f32.mxu0 %v939
        %1204 = vmatmul.mubr.f32.gmra.mrb[0].mxu0 %v1061
        %v1205 = vpop.f32.mrb[0].mxu0
        %v1206 = vadd.f32 %v1087, %v1205
        %v1207 = vpop.f32.mrb[0].mxu0
        %1208 = vmatprep.mubr.f32.mxu0 %v940
        %1209 = vmatmul.mubr.f32.gmra.mrb[0].mxu0 %v1064
        %v1210 = vpop.f32.mrb[0].mxu0
        %v1211 = vadd.f32 %v1087, %v1210
        %v1212 = vpop.f32.mrb[0].mxu0
        %1213 = vmatprep.mubr.f32.mxu0 %v941
        %1214 = vmatmul.mubr.f32.gmra.mrb[0].mxu0 %v1069
        %v1215 = vpop.f32.mrb[0].mxu0
        %v1216 = vadd.f32 %v1087, %v1215
        %v1217 = vpop.f32.mrb[0].mxu0
        %1218 = vmatprep.mubr.f32.mxu0 %v942
        %1219 = vmatmul.mubr.f32.gmra.mrb[0].mxu0 %v1072
        %v1220 = vpop.f32.mrb[0].mxu0
        %v1221 = vadd.f32 %v1087, %v1220
        %v1222 = vpop.f32.mrb[0].mxu0
        %1223 = vmatprep.mubr.f32.mxu0 %v943
        %1224 = vmatmul.mubr.f32.gmra.mrb[0].mxu0 %v1077
        %v1225 = vpop.f32.mrb[0].mxu0
        %v1226 = vadd.f32 %v1087, %v1225
        %v1227 = vpop.f32.mrb[0].mxu0
        %1228 = vmatprep.mubr.f32.mxu0 %v944
        %1229 = vmatmul.mubr.f32.gmra.mrb[0].mxu0 %v1080
        %v1230 = vpop.f32.mrb[0].mxu0
        %v1231 = vadd.f32 %v1087, %v1230
        %v1232 = vpop.f32.mrb[0].mxu0
        %1233 = vdwg.mxu0
        %v1234 = vmax.f32 %v1156, 0.0
        %v1235 = vmax.f32 %v1161, 0.0
        %v1236 = vmax.f32 %v1166, 0.0
        %v1237 = vmax.f32 %v1171, 0.0
        %v1238 = vmax.f32 %v1176, 0.0
        %v1239 = vmax.f32 %v1181, 0.0
        %v1240 = vmax.f32 %v1186, 0.0
        %v1241 = vmax.f32 %v1191, 0.0
        %v1242 = vmax.f32 %v1196, 0.0
        %v1243 = vmax.f32 %v1201, 0.0
        %v1244 = vmax.f32 %v1206, 0.0
        %v1245 = vmax.f32 %v1211, 0.0
        %v1246 = vmax.f32 %v1216, 0.0
        %v1247 = vmax.f32 %v1221, 0.0
        %v1248 = vmax.f32 %v1226, 0.0
        %v1249 = vmax.f32 %v1231, 0.0
        %v1250 = vld [vmem:[#allocation5] sm:$0xff]
        %v1251 = vld [vmem:[#allocation5 + $0x8] sm:$0xff]
        %v1252 = vld [vmem:[#allocation5 + $0x10] sm:$0xff]
        %v1253 = vld [vmem:[#allocation5 + $0x18] sm:$0xff]
        %v1254 = vld [vmem:[#allocation5 + $0x20] sm:$0xff]
        %v1255 = vld [vmem:[#allocation5 + $0x28] sm:$0xff]
        %v1256 = vld [vmem:[#allocation5 + $0x30] sm:$0xff]
        %v1257 = vld [vmem:[#allocation5 + $0x38] sm:$0xff]
        %v1258 = vld [vmem:[#allocation5 + $0x40] sm:$0xff]
        %v1259 = vld [vmem:[#allocation5 + $0x48] sm:$0xff]
        %v1260 = vld [vmem:[#allocation5 + $0x50] sm:$0xff]
        %v1261 = vld [vmem:[#allocation5 + $0x58] sm:$0xff]
        %v1262 = vld [vmem:[#allocation5 + $0x60] sm:$0xff]
        %v1263 = vld [vmem:[#allocation5 + $0x68] sm:$0xff]
        %v1264 = vld [vmem:[#allocation5 + $0x70] sm:$0xff]
        %v1265 = vld [vmem:[#allocation5 + $0x78] sm:$0xff]
        %v1266 = vld [vmem:[#allocation5 + $0x80] sm:$0xff]
        %v1267 = vld [vmem:[#allocation5 + $0x88] sm:$0xff]
        %v1268 = vld [vmem:[#allocation5 + $0x90] sm:$0xff]
        %v1269 = vld [vmem:[#allocation5 + $0x98] sm:$0xff]
        %v1270 = vld [vmem:[#allocation5 + $0xa0] sm:$0xff]
        %v1271 = vld [vmem:[#allocation5 + $0xa8] sm:$0xff]
        %v1272 = vld [vmem:[#allocation5 + $0xb0] sm:$0xff]
        %v1273 = vld [vmem:[#allocation5 + $0xb8] sm:$0xff]
        %v1274 = vld [vmem:[#allocation5 + $0xc0] sm:$0xff]
        %v1275 = vld [vmem:[#allocation5 + $0xc8] sm:$0xff]
        %v1276 = vld [vmem:[#allocation5 + $0xd0] sm:$0xff]
        %v1277 = vld [vmem:[#allocation5 + $0xd8] sm:$0xff]
        %v1278 = vld [vmem:[#allocation5 + $0xe0] sm:$0xff]
        %v1279 = vld [vmem:[#allocation5 + $0xe8] sm:$0xff]
        %v1280 = vld [vmem:[#allocation5 + $0xf0] sm:$0xff]
        %v1281 = vld [vmem:[#allocation5 + $0xf8] sm:$0xff]
        %v1282 = vld [vmem:[%s9] sm:$0x1]
        %v1283 = vpack.c.bf16 %v1235, %v1234
        %v1284 = vpack.c.bf16 %v1237, %v1236
        %v1285 = vpack.c.bf16 %v1239, %v1238
        %v1286 = vpack.c.bf16 %v1241, %v1240
        %v1287 = vpack.c.bf16 %v1243, %v1242
        %v1288 = vpack.c.bf16 %v1245, %v1244
        %v1289 = vpack.c.bf16 %v1247, %v1246
        %v1290 = vpack.c.bf16 %v1249, %v1248
        %1291 = vmatprep.subr.bf16.mxu0 0
        %1292 = vmatpush1.bf16.msra.mxu0 %v1283
        %1293 = vmatprep.subr.bf16.mxu0 0
        %1294 = vmatpush1.bf16.msra.mxu0 %v1284
        %1295 = vmatprep.subr.bf16.mxu0 0
        %1296 = vmatpush1.bf16.msra.mxu0 %v1285
        %1297 = vmatprep.subr.bf16.mxu0 0
        %1298 = vmatpush1.bf16.msra.mxu0 %v1286
        %1299 = vmatprep.subr.bf16.mxu0 0
        %1300 = vmatpush1.bf16.msra.mxu0 %v1287
        %1301 = vmatprep.subr.bf16.mxu0 0
        %1302 = vmatpush1.bf16.msra.mxu0 %v1288
        %1303 = vmatprep.subr.bf16.mxu0 0
        %1304 = vmatpush1.bf16.msra.mxu0 %v1289
        %1305 = vmatprep.subr.bf16.mxu0 0
        %1306 = vmatpush1.bf16.msra.mxu0 %v1290
        %1307 = vmatprep.subr.bf16.mxu0 0
        %1308 = vmatpush1.bf16.msra.mxu0 0
        %1309 = vmatprep.subr.bf16.mxu0 0
        %1310 = vmatpush1.bf16.msra.mxu0 0
        %1311 = vmatprep.subr.bf16.mxu0 0
        %1312 = vmatpush1.bf16.msra.mxu0 0
        %1313 = vmatprep.subr.bf16.mxu0 0
        %1314 = vmatpush1.bf16.msra.mxu0 0
        %1315 = vmatprep.subr.bf16.mxu0 0
        %1316 = vmatpush1.bf16.msra.mxu0 0
        %1317 = vmatprep.subr.bf16.mxu0 0
        %1318 = vmatpush1.bf16.msra.mxu0 0
        %1319 = vmatprep.subr.bf16.mxu0 0
        %1320 = vmatpush1.bf16.msra.mxu0 0
        %1321 = vmatprep.subr.bf16.mxu0 0
        %1322 = vmatpush1.bf16.msra.mxu0 0
        %1323 = vmatprep.mubr.bf16.mxu0 0
        %1324 = vmatmul.mubr.bf16.gmra.mrb[0].mxu0 %v571
        %v1325 = vpop.f32.mrb[0].mxu0
        %v1326 = vadd.f32 0.0, %v1325
        %v1327 = vpop.f32.mrb[0].mxu0
        %v1328 = vpop.f32.mrb[0].mxu0
        %v1329 = vadd.f32 0.0, %v1328
        %v1330 = vpop.f32.mrb[0].mxu0
        %1331 = vmatprep.mubr.bf16.mxu0 0
        %1332 = vmatmul.mubr.bf16.gmra.mrb[0].mxu0 %v572
        %v1333 = vpop.f32.mrb[0].mxu0
        %v1334 = vadd.f32 0.0, %v1333
        %v1335 = vpop.f32.mrb[0].mxu0
        %v1336 = vpop.f32.mrb[0].mxu0
        %v1337 = vadd.f32 0.0, %v1336
        %v1338 = vpop.f32.mrb[0].mxu0
        %1339 = vmatprep.mubr.bf16.mxu0 0
        %1340 = vmatmul.mubr.bf16.gmra.mrb[0].mxu0 %v573
        %v1341 = vpop.f32.mrb[0].mxu0
        %v1342 = vadd.f32 0.0, %v1341
        %v1343 = vpop.f32.mrb[0].mxu0
        %v1344 = vpop.f32.mrb[0].mxu0
        %v1345 = vadd.f32 0.0, %v1344
        %v1346 = vpop.f32.mrb[0].mxu0
        %1347 = vmatprep.mubr.bf16.mxu0 0
        %1348 = vmatmul.mubr.bf16.gmra.mrb[0].mxu0 %v574
        %v1349 = vpop.f32.mrb[0].mxu0
        %v1350 = vadd.f32 0.0, %v1349
        %v1351 = vpop.f32.mrb[0].mxu0
        %v1352 = vpop.f32.mrb[0].mxu0
        %v1353 = vadd.f32 0.0, %v1352
        %v1354 = vpop.f32.mrb[0].mxu0
        %1355 = vmatprep.mubr.bf16.mxu0 0
        %1356 = vmatmul.mubr.bf16.gmra.mrb[0].mxu0 %v575
        %v1357 = vpop.f32.mrb[0].mxu0
        %v1358 = vadd.f32 0.0, %v1357
        %v1359 = vpop.f32.mrb[0].mxu0
        %v1360 = vpop.f32.mrb[0].mxu0
        %v1361 = vadd.f32 0.0, %v1360
        %v1362 = vpop.f32.mrb[0].mxu0
        %1363 = vmatprep.mubr.bf16.mxu0 0
        %1364 = vmatmul.mubr.bf16.gmra.mrb[0].mxu0 %v576
        %v1365 = vpop.f32.mrb[0].mxu0
        %v1366 = vadd.f32 0.0, %v1365
        %v1367 = vpop.f32.mrb[0].mxu0
        %v1368 = vpop.f32.mrb[0].mxu0
        %v1369 = vadd.f32 0.0, %v1368
        %v1370 = vpop.f32.mrb[0].mxu0
        %1371 = vmatprep.mubr.bf16.mxu0 0
        %1372 = vmatmul.mubr.bf16.gmra.mrb[0].mxu0 %v577
        %v1373 = vpop.f32.mrb[0].mxu0
        %v1374 = vadd.f32 0.0, %v1373
        %v1375 = vpop.f32.mrb[0].mxu0
        %v1376 = vpop.f32.mrb[0].mxu0
        %v1377 = vadd.f32 0.0, %v1376
        %v1378 = vpop.f32.mrb[0].mxu0
        %1379 = vmatprep.mubr.bf16.mxu0 0
        %1380 = vmatmul.mubr.bf16.gmra.mrb[0].mxu0 %v578
        %v1381 = vpop.f32.mrb[0].mxu0
        %v1382 = vadd.f32 0.0, %v1381
        %v1383 = vpop.f32.mrb[0].mxu0
        %v1384 = vpop.f32.mrb[0].mxu0
        %v1385 = vadd.f32 0.0, %v1384
        %v1386 = vpop.f32.mrb[0].mxu0
        %1387 = vdwg.mxu0
        %v1389 = vlaneseq
        %v1390 = vshrl.u32 %v1389, 7
        %v1391 = vsub.s32 0, %v1390
        %v1392 = vrot.slane %v1282, %v1391
        %1394 = vmatprep.subr.mxu0 0.0
        %1395 = vmatpush1.msra.mxu0 %v1250
        %1396 = vmatprep.subr.mxu0 0.0
        %1397 = vmatpush1.msra.mxu0 %v1251
        %1398 = vmatprep.subr.mxu0 0.0
        %1399 = vmatpush1.msra.mxu0 %v1252
        %1400 = vmatprep.subr.mxu0 0.0
        %1401 = vmatpush1.msra.mxu0 %v1253
        %1402 = vmatprep.subr.mxu0 0.0
        %1403 = vmatpush1.msra.mxu0 %v1254
        %1404 = vmatprep.subr.mxu0 0.0
        %1405 = vmatpush1.msra.mxu0 %v1255
        %1406 = vmatprep.subr.mxu0 0.0
        %1407 = vmatpush1.msra.mxu0 %v1256
        %1408 = vmatprep.subr.mxu0 0.0
        %1409 = vmatpush1.msra.mxu0 %v1257
        %1410 = vmatprep.subr.mxu0 0.0
        %1411 = vmatpush1.msra.mxu0 %v1258
        %1412 = vmatprep.subr.mxu0 0.0
        %1413 = vmatpush1.msra.mxu0 %v1259
        %1414 = vmatprep.subr.mxu0 0.0
        %1415 = vmatpush1.msra.mxu0 %v1260
        %1416 = vmatprep.subr.mxu0 0.0
        %1417 = vmatpush1.msra.mxu0 %v1261
        %1418 = vmatprep.subr.mxu0 0.0
        %1419 = vmatpush1.msra.mxu0 %v1262
        %1420 = vmatprep.subr.mxu0 0.0
        %1421 = vmatpush1.msra.mxu0 %v1263
        %1422 = vmatprep.subr.mxu0 0.0
        %1423 = vmatpush1.msra.mxu0 %v1264
        %1424 = vmatprep.subr.mxu0 0.0
        %1425 = vmatpush1.msra.mxu0 %v1265
        %1426 = vmatprep.subr.mxu0 0.0
        %1427 = vmatpush1.msra.mxu0 %v1266
        %1428 = vmatprep.subr.mxu0 0.0
        %1429 = vmatpush1.msra.mxu0 %v1267
        %1430 = vmatprep.subr.mxu0 0.0
        %1431 = vmatpush1.msra.mxu0 %v1268
        %1432 = vmatprep.subr.mxu0 0.0
        %1433 = vmatpush1.msra.mxu0 %v1269
        %1434 = vmatprep.subr.mxu0 0.0
        %1435 = vmatpush1.msra.mxu0 %v1270
        %1436 = vmatprep.subr.mxu0 0.0
        %1437 = vmatpush1.msra.mxu0 %v1271
        %1438 = vmatprep.subr.mxu0 0.0
        %1439 = vmatpush1.msra.mxu0 %v1272
        %1440 = vmatprep.subr.mxu0 0.0
        %1441 = vmatpush1.msra.mxu0 %v1273
        %1442 = vmatprep.subr.mxu0 0.0
        %1443 = vmatpush1.msra.mxu0 %v1274
        %1444 = vmatprep.subr.mxu0 0.0
        %1445 = vmatpush1.msra.mxu0 %v1275
        %1446 = vmatprep.subr.mxu0 0.0
        %1447 = vmatpush1.msra.mxu0 %v1276
        %1448 = vmatprep.subr.mxu0 0.0
        %1449 = vmatpush1.msra.mxu0 %v1277
        %1450 = vmatprep.subr.mxu0 0.0
        %1451 = vmatpush1.msra.mxu0 %v1278
        %1452 = vmatprep.subr.mxu0 0.0
        %1453 = vmatpush1.msra.mxu0 %v1279
        %1454 = vmatprep.subr.mxu0 0.0
        %1455 = vmatpush1.msra.mxu0 %v1280
        %1456 = vmatprep.subr.mxu0 0.0
        %1457 = vmatpush1.msra.mxu0 %v1281
        %1458 = vmatprep.mubr.f32.mxu0 %v1234
        %1459 = vmatmul.mubr.f32.gmra.mrb[0].mxu0 %v1326
        %v1460 = vpop.f32.mrb[0].mxu0
        %v1461 = vadd.f32 %v1392, %v1460
        %v1462 = vpop.f32.mrb[0].mxu0
        %1463 = vmatprep.mubr.f32.mxu0 %v1235
        %1464 = vmatmul.mubr.f32.gmra.mrb[0].mxu0 %v1329
        %v1465 = vpop.f32.mrb[0].mxu0
        %v1466 = vadd.f32 %v1392, %v1465
        %v1467 = vpop.f32.mrb[0].mxu0
        %1468 = vmatprep.mubr.f32.mxu0 %v1236
        %1469 = vmatmul.mubr.f32.gmra.mrb[0].mxu0 %v1334
        %v1470 = vpop.f32.mrb[0].mxu0
        %v1471 = vadd.f32 %v1392, %v1470
        %v1472 = vpop.f32.mrb[0].mxu0
        %1473 = vmatprep.mubr.f32.mxu0 %v1237
        %1474 = vmatmul.mubr.f32.gmra.mrb[0].mxu0 %v1337
        %v1475 = vpop.f32.mrb[0].mxu0
        %v1476 = vadd.f32 %v1392, %v1475
        %v1477 = vpop.f32.mrb[0].mxu0
        %1478 = vmatprep.mubr.f32.mxu0 %v1238
        %1479 = vmatmul.mubr.f32.gmra.mrb[0].mxu0 %v1342
        %v1480 = vpop.f32.mrb[0].mxu0
        %v1481 = vadd.f32 %v1392, %v1480
        %v1482 = vpop.f32.mrb[0].mxu0
        %1483 = vmatprep.mubr.f32.mxu0 %v1239
        %1484 = vmatmul.mubr.f32.gmra.mrb[0].mxu0 %v1345
        %v1485 = vpop.f32.mrb[0].mxu0
        %v1486 = vadd.f32 %v1392, %v1485
        %v1487 = vpop.f32.mrb[0].mxu0
        %1488 = vmatprep.mubr.f32.mxu0 %v1240
        %1489 = vmatmul.mubr.f32.gmra.mrb[0].mxu0 %v1350
        %v1490 = vpop.f32.mrb[0].mxu0
        %v1491 = vadd.f32 %v1392, %v1490
        %v1492 = vpop.f32.mrb[0].mxu0
        %1493 = vmatprep.mubr.f32.mxu0 %v1241
        %1494 = vmatmul.mubr.f32.gmra.mrb[0].mxu0 %v1353
        %v1495 = vpop.f32.mrb[0].mxu0
        %v1496 = vadd.f32 %v1392, %v1495
        %v1497 = vpop.f32.mrb[0].mxu0
        %1498 = vmatprep.mubr.f32.mxu0 %v1242
        %1499 = vmatmul.mubr.f32.gmra.mrb[0].mxu0 %v1358
        %v1500 = vpop.f32.mrb[0].mxu0
        %v1501 = vadd.f32 %v1392, %v1500
        %v1502 = vpop.f32.mrb[0].mxu0
        %1503 = vmatprep.mubr.f32.mxu0 %v1243
        %1504 = vmatmul.mubr.f32.gmra.mrb[0].mxu0 %v1361
        %v1505 = vpop.f32.mrb[0].mxu0
        %v1506 = vadd.f32 %v1392, %v1505
        %v1507 = vpop.f32.mrb[0].mxu0
        %1508 = vmatprep.mubr.f32.mxu0 %v1244
        %1509 = vmatmul.mubr.f32.gmra.mrb[0].mxu0 %v1366
        %v1510 = vpop.f32.mrb[0].mxu0
        %v1511 = vadd.f32 %v1392, %v1510
        %v1512 = vpop.f32.mrb[0].mxu0
        %1513 = vmatprep.mubr.f32.mxu0 %v1245
        %1514 = vmatmul.mubr.f32.gmra.mrb[0].mxu0 %v1369
        %v1515 = vpop.f32.mrb[0].mxu0
        %v1516 = vadd.f32 %v1392, %v1515
        %v1517 = vpop.f32.mrb[0].mxu0
        %1518 = vmatprep.mubr.f32.mxu0 %v1246
        %1519 = vmatmul.mubr.f32.gmra.mrb[0].mxu0 %v1374
        %v1520 = vpop.f32.mrb[0].mxu0
        %v1521 = vadd.f32 %v1392, %v1520
        %v1522 = vpop.f32.mrb[0].mxu0
        %1523 = vmatprep.mubr.f32.mxu0 %v1247
        %1524 = vmatmul.mubr.f32.gmra.mrb[0].mxu0 %v1377
        %v1525 = vpop.f32.mrb[0].mxu0
        %v1526 = vadd.f32 %v1392, %v1525
        %v1527 = vpop.f32.mrb[0].mxu0
        %1528 = vmatprep.mubr.f32.mxu0 %v1248
        %1529 = vmatmul.mubr.f32.gmra.mrb[0].mxu0 %v1382
        %v1530 = vpop.f32.mrb[0].mxu0
        %v1531 = vadd.f32 %v1392, %v1530
        %v1532 = vpop.f32.mrb[0].mxu0
        %1533 = vmatprep.mubr.f32.mxu0 %v1249
        %1534 = vmatmul.mubr.f32.gmra.mrb[0].mxu0 %v1385
        %v1535 = vpop.f32.mrb[0].mxu0
        %v1536 = vadd.f32 %v1392, %v1535
        %v1537 = vpop.f32.mrb[0].mxu0
        %1538 = vdwg.mxu0
        %v1539 = vld [vmem:[%s492] sm:$0xff]
        %1540 = vmatprep.subr.mxu0 0.0
        %1541 = vmatpush1.msra.mxu0 %v1461
        %1542 = vmatprep.subr.mxu0 0.0
        %1543 = vmatpush1.msra.mxu0 %v1466
        %1544 = vmatprep.subr.mxu0 0.0
        %1545 = vmatpush1.msra.mxu0 %v1471
        %1546 = vmatprep.subr.mxu0 0.0
        %1547 = vmatpush1.msra.mxu0 %v1476
        %1548 = vmatprep.subr.mxu0 0.0
        %1549 = vmatpush1.msra.mxu0 %v1481
        %1550 = vmatprep.subr.mxu0 0.0
        %1551 = vmatpush1.msra.mxu0 %v1486
        %1552 = vmatprep.subr.mxu0 0.0
        %1553 = vmatpush1.msra.mxu0 %v1491
        %1554 = vmatprep.subr.mxu0 0.0
        %1555 = vmatpush1.msra.mxu0 %v1496
        %1556 = vmatprep.subr.mxu0 0.0
        %1557 = vmatpush1.msra.mxu0 %v1501
        %1558 = vmatprep.subr.mxu0 0.0
        %1559 = vmatpush1.msra.mxu0 %v1506
        %1560 = vmatprep.subr.mxu0 0.0
        %1561 = vmatpush1.msra.mxu0 %v1511
        %1562 = vmatprep.subr.mxu0 0.0
        %1563 = vmatpush1.msra.mxu0 %v1516
        %1564 = vmatprep.subr.mxu0 0.0
        %1565 = vmatpush1.msra.mxu0 %v1521
        %1566 = vmatprep.subr.mxu0 0.0
        %1567 = vmatpush1.msra.mxu0 %v1526
        %1568 = vmatprep.subr.mxu0 0.0
        %1569 = vmatpush1.msra.mxu0 %v1531
        %1570 = vmatprep.subr.mxu0 0.0
        %1571 = vmatpush1.msra.mxu0 %v1536
        %1572 = vmatprep.subr.mxu0 0.0
        %1573 = vmatpush1.msra.mxu0 0.0
        %1574 = vmatprep.subr.mxu0 0.0
        %1575 = vmatpush1.msra.mxu0 0.0
        %1576 = vmatprep.subr.mxu0 0.0
        %1577 = vmatpush1.msra.mxu0 0.0
        %1578 = vmatprep.subr.mxu0 0.0
        %1579 = vmatpush1.msra.mxu0 0.0
        %1580 = vmatprep.subr.mxu0 0.0
        %1581 = vmatpush1.msra.mxu0 0.0
        %1582 = vmatprep.subr.mxu0 0.0
        %1583 = vmatpush1.msra.mxu0 0.0
        %1584 = vmatprep.subr.mxu0 0.0
        %1585 = vmatpush1.msra.mxu0 0.0
        %1586 = vmatprep.subr.mxu0 0.0
        %1587 = vmatpush1.msra.mxu0 0.0
        %1588 = vmatprep.subr.mxu0 0.0
        %1589 = vmatpush1.msra.mxu0 0.0
        %1590 = vmatprep.subr.mxu0 0.0
        %1591 = vmatpush1.msra.mxu0 0.0
        %1592 = vmatprep.subr.mxu0 0.0
        %1593 = vmatpush1.msra.mxu0 0.0
        %1594 = vmatprep.subr.mxu0 0.0
        %1595 = vmatpush1.msra.mxu0 0.0
        %1596 = vmatprep.subr.mxu0 0.0
        %1597 = vmatpush1.msra.mxu0 0.0
        %1598 = vmatprep.subr.mxu0 0.0
        %1599 = vmatpush1.msra.mxu0 0.0
        %1600 = vmatprep.subr.mxu0 0.0
        %1601 = vmatpush1.msra.mxu0 0.0
        %1602 = vmatprep.subr.mxu0 0.0
        %1603 = vmatpush1.msra.mxu0 0.0
        %1604 = vmatprep.mubr.f32.mxu0 0.0
        %1605 = vmatmul.mubr.f32.gmra.mrb[0].mxu0 %v1539
        %v1606 = vpop.f32.mrb[0].mxu0
        %v1607 = vadd.f32 0.0, %v1606
        %v1608 = vpop.f32.mrb[0].mxu0
        %1609 = vdwg.mxu0
        %v1610 = vld [vmem:[#allocation7] sm:$0xff]
        %v1611 = vld [vmem:[#allocation7 + $0x8] sm:$0xff]
        %v1612 = vld [vmem:[#allocation7 + $0x10] sm:$0xff]
        %v1613 = vld [vmem:[#allocation7 + $0x18] sm:$0xff]
        %v1614 = vld [vmem:[#allocation7 + $0x20] sm:$0xff]
        %v1615 = vld [vmem:[#allocation7 + $0x28] sm:$0xff]
        %v1616 = vld [vmem:[#allocation7 + $0x30] sm:$0xff]
        %v1617 = vld [vmem:[#allocation7 + $0x38] sm:$0xff]
        %v1618 = vld [vmem:[#allocation7 + $0x40] sm:$0xff]
        %v1619 = vld [vmem:[#allocation7 + $0x48] sm:$0xff]
        %v1620 = vld [vmem:[#allocation7 + $0x50] sm:$0xff]
        %v1621 = vld [vmem:[#allocation7 + $0x58] sm:$0xff]
        %v1622 = vld [vmem:[#allocation7 + $0x60] sm:$0xff]
        %v1623 = vld [vmem:[#allocation7 + $0x68] sm:$0xff]
        %v1624 = vld [vmem:[#allocation7 + $0x70] sm:$0xff]
        %v1625 = vld [vmem:[#allocation7 + $0x78] sm:$0xff]
        %v1626 = vld [vmem:[%s11] sm:$0x1]
        %v1628 = vlaneseq
        %v1629 = vshrl.u32 %v1628, 7
        %v1630 = vsub.s32 0, %v1629
        %v1631 = vrot.slane %v1626, %v1630
        %1633 = vmatprep.subr.mxu0 0.0
        %1634 = vmatpush1.msra.mxu0 %v1610
        %1635 = vmatprep.subr.mxu0 0.0
        %1636 = vmatpush1.msra.mxu0 %v1611
        %1637 = vmatprep.subr.mxu0 0.0
        %1638 = vmatpush1.msra.mxu0 %v1612
        %1639 = vmatprep.subr.mxu0 0.0
        %1640 = vmatpush1.msra.mxu0 %v1613
        %1641 = vmatprep.subr.mxu0 0.0
        %1642 = vmatpush1.msra.mxu0 %v1614
        %1643 = vmatprep.subr.mxu0 0.0
        %1644 = vmatpush1.msra.mxu0 %v1615
        %1645 = vmatprep.subr.mxu0 0.0
        %1646 = vmatpush1.msra.mxu0 %v1616
        %1647 = vmatprep.subr.mxu0 0.0
        %1648 = vmatpush1.msra.mxu0 %v1617
        %1649 = vmatprep.subr.mxu0 0.0
        %1650 = vmatpush1.msra.mxu0 %v1618
        %1651 = vmatprep.subr.mxu0 0.0
        %1652 = vmatpush1.msra.mxu0 %v1619
        %1653 = vmatprep.subr.mxu0 0.0
        %1654 = vmatpush1.msra.mxu0 %v1620
        %1655 = vmatprep.subr.mxu0 0.0
        %1656 = vmatpush1.msra.mxu0 %v1621
        %1657 = vmatprep.subr.mxu0 0.0
        %1658 = vmatpush1.msra.mxu0 %v1622
        %1659 = vmatprep.subr.mxu0 0.0
        %1660 = vmatpush1.msra.mxu0 %v1623
        %1661 = vmatprep.subr.mxu0 0.0
        %1662 = vmatpush1.msra.mxu0 %v1624
        %1663 = vmatprep.subr.mxu0 0.0
        %1664 = vmatpush1.msra.mxu0 %v1625
        %1665 = vmatprep.subr.mxu0 0.0
        %1666 = vmatpush1.msra.mxu0 0.0
        %1667 = vmatprep.subr.mxu0 0.0
        %1668 = vmatpush1.msra.mxu0 0.0
        %1669 = vmatprep.subr.mxu0 0.0
        %1670 = vmatpush1.msra.mxu0 0.0
        %1671 = vmatprep.subr.mxu0 0.0
        %1672 = vmatpush1.msra.mxu0 0.0
        %1673 = vmatprep.subr.mxu0 0.0
        %1674 = vmatpush1.msra.mxu0 0.0
        %1675 = vmatprep.subr.mxu0 0.0
        %1676 = vmatpush1.msra.mxu0 0.0
        %1677 = vmatprep.subr.mxu0 0.0
        %1678 = vmatpush1.msra.mxu0 0.0
        %1679 = vmatprep.subr.mxu0 0.0
        %1680 = vmatpush1.msra.mxu0 0.0
        %1681 = vmatprep.subr.mxu0 0.0
        %1682 = vmatpush1.msra.mxu0 0.0
        %1683 = vmatprep.subr.mxu0 0.0
        %1684 = vmatpush1.msra.mxu0 0.0
        %1685 = vmatprep.subr.mxu0 0.0
        %1686 = vmatpush1.msra.mxu0 0.0
        %1687 = vmatprep.subr.mxu0 0.0
        %1688 = vmatpush1.msra.mxu0 0.0
        %1689 = vmatprep.subr.mxu0 0.0
        %1690 = vmatpush1.msra.mxu0 0.0
        %1691 = vmatprep.subr.mxu0 0.0
        %1692 = vmatpush1.msra.mxu0 0.0
        %1693 = vmatprep.subr.mxu0 0.0
        %1694 = vmatpush1.msra.mxu0 0.0
        %1695 = vmatprep.subr.mxu0 0.0
        %1696 = vmatpush1.msra.mxu0 0.0
        %1697 = vmatprep.mubr.f32.mxu0 0.0
        %1698 = vmatmul.mubr.f32.gmra.mrb[0].mxu0 %v1607
        %v1699 = vpop.f32.mrb[0].mxu0
        %v1700 = vadd.f32 %v1631, %v1699
        %v1701 = vpop.f32.mrb[0].mxu0
        %1702 = vdwg.mxu0
        %1703 = vst [vmem:[%s488] sm:$0xff] %v1700
        %s1704 = sand.u32 %s305, 1
        %s1705 = scalar_lea.sflag [#allocation4], %s1704
        %s1706 = sand.u32 %s305, 1
        %s1707 = smul.addr %s1706, 8
        %s1708 = scalar_lea.vmem [#allocation8], %s1707
        // Predicated region
        $region81: #{tpu_custom_call.1} parent=67 // pred_check
          %p1709 = pneg %p315
        $region82: #{tpu_custom_call.1} parent=67 // pred_check_branch
          %1711 = sbr.rel (%p1709) target = $region84
        $region83: #{tpu_custom_call.1} parent=67 // pred_region
          %s1713 = ssub.s32 128, 128
          %1714 = vsyncadd %s1705, %s1713
          %s1715 = smul.addr %s30, 128
          %s1716 = scalar_lea.hbm %s12, %s1715
          %s1718 = sshll.u32 %s1708, 4
          %s1719 = int_to_ptr.vmem [resolvable:$true] %s1718
          %1721 = dma.vmem_to_hbm [thread:$0]  %s1719, 128, %s1716, %s1705
        $region84: #{tpu_custom_call.1} parent=67 // pred_fallthru
          _
      $region68: #{tpu_custom_call.1} parent=5 // pred_fallthru
        _
      %p1722 = scmp.le.s32.totalorder 2, %s25
      // Predicated region
      $region85: #{tpu_custom_call.1} parent=5 // pred_check
        %p1723 = pneg %p1722
      $region86: #{tpu_custom_call.1} parent=5 // pred_check_branch
        %1725 = sbr.rel (%p1723) target = $region88
      $region87: #{tpu_custom_call.1} parent=5 // pred_region
        %s1726 = ssub.s32 %s25, 2
        // Predicated region
        $region89: #{tpu_custom_call.1} parent=87 // pred_check
          %p1727 = pneg %p321
        $region90: #{tpu_custom_call.1} parent=87 // pred_check_branch
          %1729 = sbr.rel (%p1727) target = $region92
        $region91: #{tpu_custom_call.1} parent=87 // pred_region
          %s1730 = sand.u32 %s306, 1
          %s1731 = scalar_lea.sflag [#allocation4], %s1730
          %s1732 = sand.u32 %s306, 1
          %s1733 = smul.addr %s1732, 8
          %s1734 = scalar_lea.vmem [#allocation8], %s1733
          %1735 = dma.done %s1731, 128
        $region92: #{tpu_custom_call.1} parent=87 // pred_fallthru
          _
      $region88: #{tpu_custom_call.1} parent=5 // pred_fallthru
        _
    $region6: #{tpu_custom_call.1} parent=1 // loop_footer
      %s29 = sadd.s32 1, %s25
    $region7: #{tpu_custom_call.1} parent=1 // loop_footer_branch
      %24 = sbr.rel target = $region3
    $region8: #{tpu_custom_call.1} parent=1 // loop_exit
      _
    %1736 = vsyncpa [#allocation3], 1
    %s1737 = scalar_lea.sflag [#allocation3], 1
    %1738 = vsyncpa %s1737, 1
    %1739 = vsyncpa [#allocation6], 1
    %1740 = vsyncpa [#allocation4], 1
    %s1741 = scalar_lea.sflag [#allocation4], 1
    %1742 = vsyncpa %s1741, 1

</llo_original>
